<compile_context>
chip_gen: v5e
topology: v5e:2x2
jax: 0.10.0
libtpu: 0.0.40
codegen_flags: <defaults>
</compile_context>

<pallas_src>
import functools

import jax
import jax.numpy as jnp
from jax.experimental import pallas as pl
from jax.experimental.pallas import tpu as pltpu


def make_divisible(v, divisor=8, min_value=None):
    min_value = min_value or divisor
    new_v = max(min_value, int(v + divisor / 2) // divisor * divisor)
    if new_v < 0.9 * v:
        new_v += divisor
    return new_v


def _round_up(v, m):
    return (v + m - 1) // m * m


def _pad2(a, r, c):
    return jnp.pad(a, ((0, r - a.shape[0]), (0, c - a.shape[1])))


def _pick_tile_h(H, W, target_rows=256):
    """Largest divisor of H whose tile presents ~target_rows rows to the MXU."""
    want = max(1, min(H, -(-target_rows // max(W, 1))))
    best = 1
    for d in range(1, H + 1):
        if H % d == 0 and d <= want:
            best = d
    return best


# --------------------------- pass 1: core kernel ---------------------------


def _semlp_core_kernel(x_hbm, fc1w_ref, fc1b_ref, dww_ref, dwb_ref, gamma_ref,
                       fc2w_ref, fc2b_ref, rowm_ref, colm_ref,
                       out_ref, sesum_ref, xbuf, sem, *, TH, W):
    b = pl.program_id(0)
    t = pl.program_id(1)
    nt = pl.num_programs(1)
    slot = t % 2
    rows = (TH + 2) * W          # halo'd tile, in tokens
    tile_tokens = TH * W

    def start_fetch(tt, s):
        pltpu.make_async_copy(x_hbm.at[b, pl.ds(tt * tile_tokens, rows)],
                              xbuf.at[s], sem.at[s]).start()

    # First tile of this image: nothing is in flight yet.
    @pl.when(t == 0)
    def _():
        start_fetch(0, 0)

    # Wait for this step's tile (started above if t==0, else at the previous t).
    pltpu.make_async_copy(x_hbm.at[b, pl.ds(t * tile_tokens, rows)],
                          xbuf.at[slot], sem.at[slot]).wait()

    # Prefetch the next tile of the *same* image (the chain never crosses b, so
    # megacore sharding of the batch axis stays self-contained).
    @pl.when(t + 1 < nt)
    def _():
        start_fetch(t + 1, 1 - slot)

    # ---- fc1 (MXU: bf16 operands, f32 accumulation) ----
    x2 = xbuf[slot]                                          # (rows, Cp) bf16
    h2 = jnp.dot(x2, fc1w_ref[...], preferred_element_type=jnp.float32)
    # Zero halo rows that fall outside the image: x there is zero-padded, so h
    # would otherwise hold the fc1 bias; the conv zero-padding must see zeros.
    h2 = (h2 + fc1b_ref[...]) * rowm_ref[0]                  # (rows, HIDp) f32
    hidp = h2.shape[-1]

    # ---- depthwise 3x3 conv ----
    # Column (W) shifts: XLU roll of the flattened token axis + boundary masks
    # (the wrapped element always lands on a masked column, so the roll
    # direction at the edge is irrelevant).  Row shifts are static slices.
    cm = colm_ref[...]                                       # (2, rows, 1) f32
    h2_m1 = pltpu.roll(h2, 1, 0) * cm[0]                     # h[y, x-1], 0 @ x==0
    h2_p1 = pltpu.roll(h2, rows - 1, 0) * cm[1]              # h[y, x+1], 0 @ x==W-1
    taps = (h2_m1.reshape(TH + 2, W, hidp),
            h2.reshape(TH + 2, W, hidp),
            h2_p1.reshape(TH + 2, W, hidp))

    dww = dww_ref[...]                                       # (3, 3, HIDp)
    acc = jnp.zeros((TH, W, hidp), jnp.float32) + dwb_ref[...]
    for dy in range(3):
        for dx in range(3):
            acc = acc + taps[dx][dy:dy + TH] * dww[dy, dx]

    # ---- gamma * conv + residual, then fc2 (bf16 operands, f32 accum) ----
    y = gamma_ref[...] * acc + taps[1][1:TH + 1]
    y2 = y.reshape(tile_tokens, hidp).astype(jnp.bfloat16)
    out = jnp.dot(y2, fc2w_ref[...], preferred_element_type=jnp.float32)
    out = out + fc2b_ref[...]                                # (TH*W, Cp) f32
    out_ref[0] = out.astype(out_ref.dtype)

    # ---- SqueezeExcite, pass 1: accumulate per-channel token sums over tiles.
    @pl.when(t == 0)
    def _():
        sesum_ref[...] = jnp.zeros_like(sesum_ref)

    sesum_ref[0] = sesum_ref[0] + jnp.sum(out, axis=0, keepdims=True)


# --------------------------- pass 2: SE gate kernel -------------------------


def _se_gate_kernel(out_ref_in, sesum_ref, serw_ref, serb_ref, seew_ref,
                    seeb_ref, o_ref, *, inv_n):
    # Gate is recomputed per tile (Cp x REDp work, negligible) so both grid
    # axes remain fully "parallel" with no cross-step state.
    s = sesum_ref[0] * inv_n                                 # (1, Cp)
    r = jnp.dot(s, serw_ref[...], preferred_element_type=jnp.float32)
    r = jnp.maximum(r + serb_ref[...], 0.0)
    g = jnp.dot(r, seew_ref[...], preferred_element_type=jnp.float32)
    g = jax.nn.sigmoid(g + seeb_ref[...])                    # (1, Cp)
    o_ref[0] = (out_ref_in[0] * g).astype(o_ref.dtype)


# ------------------------------- wrapper ------------------------------------


def semlp_pallas(x, params, H, W, tile_h=None):
    B, N, C = x.shape
    assert N == H * W
    hid = params["fc1_w"].shape[1]
    red = params["se_rw"].shape[1]

    Cp = _round_up(C, 128)
    HIDp = _round_up(hid, 128)
    REDp = _round_up(red, 128)

    TH = tile_h if tile_h is not None else _pick_tile_h(H, W)
    if H % TH != 0:
        raise ValueError(f"tile_h={TH} must divide H={H}")
    n_tiles = H // TH
    rows = (TH + 2) * W
    tile_tokens = TH * W

    f32, bf16 = jnp.float32, jnp.bfloat16

    # Channel-padded parameters (zero padding is exact end-to-end; matmul
    # weights stored bf16 to halve their DMA / VMEM footprint).
    fc1w = _pad2(params["fc1_w"], Cp, HIDp).astype(bf16)
    fc1b = _pad2(params["fc1_b"], 1, HIDp).astype(f32)
    dww = jnp.pad(params["dw_w"], ((0, 0), (0, 0), (0, HIDp - hid))).astype(f32)
    dwb = _pad2(params["dw_b"], 1, HIDp).astype(f32)
    gamma = _pad2(params["gamma"], 1, HIDp).astype(f32)
    fc2w = _pad2(params["fc2_w"], HIDp, Cp).astype(bf16)
    fc2b = _pad2(params["fc2_b"], 1, Cp).astype(f32)
    serw = _pad2(params["se_rw"], Cp, REDp).astype(f32)
    serb = _pad2(params["se_rb"], 1, REDp).astype(f32)
    seew = _pad2(params["se_ew"], REDp, Cp).astype(f32)
    seeb = _pad2(params["se_eb"], 1, Cp).astype(f32)

    # x: (B, N, C) -> (B, (H+2)*W, Cp) bf16, one zero halo row top and bottom.
    # Tiles cover whole image rows, so each halo'd tile is a contiguous token
    # range => a single rectangular DMA.  (W a multiple of 8 keeps the in-
    # kernel token<->(H,W) reshapes layout-preserving.)
    x4 = x.reshape(B, H, W, C)
    xp = jnp.pad(x4, ((0, 0), (1, 1), (0, 0), (0, Cp - C)))
    xp = xp.astype(bf16).reshape(B, (H + 2) * W, Cp)

    # Precomputed boundary masks (no in-kernel iota / padded scratch buffer).
    tile_rows = (jnp.arange(n_tiles)[:, None] * TH - 1
                 + jnp.arange(TH + 2)[None, :])              # global image row
    rowmask = ((tile_rows >= 0) & (tile_rows < H)).astype(f32)
    rowmask = jnp.repeat(rowmask, W, axis=1)[:, :, None]     # (n_tiles, rows, 1)
    colw = jnp.arange(W)
    colmask = jnp.stack([jnp.tile(colw >= 1, TH + 2),
                         jnp.tile(colw <= W - 2, TH + 2)]
                        ).astype(f32)[:, :, None]            # (2, rows, 1)

    # VMEM budget (v7x has only 64 MiB physical; leave headroom).
    vmem_est = (
        2 * rows * Cp * 2                                    # x double buffer (bf16)
        + 2 * 2 * (Cp * HIDp + HIDp * Cp)                    # fc1/fc2 weights, 2 bufs
        + 2 * 4 * (12 * HIDp + 2 * Cp + 3 * rows)            # small f32 params + masks
        + 2 * 4 * (tile_tokens * Cp + Cp)                    # out tile + SE sums
        + 12 * 4 * rows * HIDp                               # h, shifted taps, acc, y
    )
    vmem_limit = int(min(max(2 * vmem_est, 32 * 2**20), 64 * 2**20))

    cost1 = pl.CostEstimate(
        flops=int(2 * B * N * (Cp * HIDp + HIDp * Cp) + 20 * B * N * HIDp),
        transcendentals=0,
        bytes_accessed=int(xp.size * 2 + 4 * B * N * Cp + 4 * B * Cp
                           + 2 * (Cp * HIDp + HIDp * Cp) + 4 * 14 * HIDp),
    )

    kernel1 = functools.partial(_semlp_core_kernel, TH=TH, W=W)
    out, se_sum = pl.pallas_call(
        kernel1,
        out_shape=(jax.ShapeDtypeStruct((B, N, Cp), f32),
                   jax.ShapeDtypeStruct((B, 1, Cp), f32)),
        grid_spec=pltpu.PrefetchScalarGridSpec(
            num_scalar_prefetch=0,
            grid=(B, n_tiles),
            in_specs=[
                pl.BlockSpec(memory_space=pl.ANY),                      # x (HBM)
                pl.BlockSpec((Cp, HIDp), lambda b, t: (0, 0)),          # fc1_w
                pl.BlockSpec((1, HIDp), lambda b, t: (0, 0)),           # fc1_b
                pl.BlockSpec((3, 3, HIDp), lambda b, t: (0, 0, 0)),     # dw_w
                pl.BlockSpec((1, HIDp), lambda b, t: (0, 0)),           # dw_b
                pl.BlockSpec((1, HIDp), lambda b, t: (0, 0)),           # gamma
                pl.BlockSpec((HIDp, Cp), lambda b, t: (0, 0)),          # fc2_w
                pl.BlockSpec((1, Cp), lambda b, t: (0, 0)),             # fc2_b
                pl.BlockSpec((1, rows, 1), lambda b, t: (t, 0, 0)),     # row mask
                pl.BlockSpec((2, rows, 1), lambda b, t: (0, 0, 0)),     # col masks
            ],
            out_specs=(
                pl.BlockSpec((1, tile_tokens, Cp), lambda b, t: (b, t, 0)),
                pl.BlockSpec((1, 1, Cp), lambda b, t: (b, 0, 0)),
            ),
            scratch_shapes=[
                pltpu.VMEM((2, rows, Cp), bf16),        # double-buffered x tile
                pltpu.SemaphoreType.DMA((2,)),
            ],
        ),
        compiler_params=pltpu.CompilerParams(
            dimension_semantics=("parallel", "arbitrary"),
            vmem_limit_bytes=vmem_limit,
        ),
        cost_estimate=cost1,
    )(xp, fc1w, fc1b, dww, dwb, gamma, fc2w, fc2b, rowmask, colmask)

    # Pass 2: apply the SqueezeExcite gate (lane-dense output store).
    cost2 = pl.CostEstimate(
        flops=int(2 * B * N * Cp + 4 * B * n_tiles * Cp * REDp),
        transcendentals=int(B * n_tiles * Cp),
        bytes_accessed=int(8 * B * N * Cp),
    )
    kernel2 = functools.partial(_se_gate_kernel, inv_n=1.0 / float(N))
    gated = pl.pallas_call(
        kernel2,
        out_shape=jax.ShapeDtypeStruct((B, N, Cp), x.dtype),
        grid_spec=pltpu.PrefetchScalarGridSpec(
            num_scalar_prefetch=0,
            grid=(B, n_tiles),
            in_specs=[
                pl.BlockSpec((1, tile_tokens, Cp), lambda b, t: (b, t, 0)),
                pl.BlockSpec((1, 1, Cp), lambda b, t: (b, 0, 0)),
                pl.BlockSpec((Cp, REDp), lambda b, t: (0, 0)),
                pl.BlockSpec((1, REDp), lambda b, t: (0, 0)),
                pl.BlockSpec((REDp, Cp), lambda b, t: (0, 0)),
                pl.BlockSpec((1, Cp), lambda b, t: (0, 0)),
            ],
            out_specs=pl.BlockSpec((1, tile_tokens, Cp), lambda b, t: (b, t, 0)),
        ),
        compiler_params=pltpu.CompilerParams(
            dimension_semantics=("parallel", "parallel")),
        cost_estimate=cost2,
    )(out, se_sum, serw, serb, seew, seeb)

    return gated[:, :, :C]


# --------------------------- reference (pure JAX) ---------------------------


def semlp_ref(x, params, H, W):
    B, N, C = x.shape
    h = x @ params["fc1_w"] + params["fc1_b"]
    hid = h.shape[-1]
    h3 = h.reshape(B, H, W, hid)
    hp = jnp.pad(h3, ((0, 0), (1, 1), (1, 1), (0, 0)))
    dw = jnp.zeros_like(h3) + params["dw_b"]
    for dy in range(3):
        for dx in range(3):
            dw = dw + hp[:, dy:dy + H, dx:dx + W, :] * params["dw_w"][dy, dx]
    y = params["gamma"] * dw.reshape(B, N, hid) + h
    out = y @ params["fc2_w"] + params["fc2_b"]
    s = out.mean(axis=1)                                     # (B, C)
    r = jax.nn.relu(s @ params["se_rw"] + params["se_rb"])
    g = jax.nn.sigmoid(r @ params["se_ew"] + params["se_eb"])
    return out * g[:, None, :]


# ---------------------------- parameter init --------------------------------


def init_params(key, in_features, hidden_features):
    # Non-zero biases are used on purpose (unlike the torch init) so the test
    # actually exercises the conv's zero padding vs. the fc1-bias distinction.
    C, hid = in_features, hidden_features
    reduced = make_divisible(C * 0.25, divisor=1)
    ks = jax.random.split(key, 11)
    f32 = jnp.float32
    n = lambda k, shape, s: s * jax.random.normal(k, shape, f32)
    return {
        "fc1_w": n(ks[0], (C, hid), 0.25),       # Linear weights stored (in, out)
        "fc1_b": n(ks[1], (1, hid), 0.5),
        "dw_w": n(ks[2], (3, 3, hid), 0.3),      # torch (dim,1,3,3) -> (3,3,dim)
        "dw_b": n(ks[3], (1, hid), 0.5),
        "gamma": 1.0 + n(ks[4], (1, hid), 0.2),
        "fc2_w": n(ks[5], (hid, C), 0.2),
        "fc2_b": n(ks[6], (1, C), 0.3),
        "se_rw": n(ks[7], (C, reduced), 0.4),    # SE 1x1 convs as (in, out)
        "se_rb": n(ks[8], (1, reduced), 0.2),
        "se_ew": n(ks[9], (reduced, C), 0.4),
        "se_eb": n(ks[10], (1, C), 0.2),
    }


if __name__ == "__main__":
    B, H, W = 2, 8, 8
    C = 16            # in_features == out_features (required by the SE reshape)
    hidden = 32
    N = H * W

    key = jax.random.PRNGKey(0)
    kx, kp = jax.random.split(key)
    x = jax.random.normal(kx, (B, N, C), jnp.float32)
    params = init_params(kp, C, hidden)

    # tile_h=4 -> 2 row-tiles per image, exercising the tiled / halo / SE
    # accumulation path (the default heuristic would pick a full-image tile
    # at these tiny shapes).
    fwd = jax.jit(lambda xx: semlp_pallas(xx, params, H, W, tile_h=4))
    out = jax.block_until_ready(fwd(x))

    ref = semlp_ref(x, params, H, W)
    assert out.shape == (B, N, C)
    err = float(jnp.max(jnp.abs(out - ref)))
    scale = float(jnp.max(jnp.abs(ref))) + 1e-6
    # bf16 MXU operands + f32 accumulation vs. an all-f32 reference.
    assert err / scale < 4e-2, (err, scale)

    print("KERNEL_OK")
</pallas_src>

<mosaic_0001>
module attributes {stable_mosaic.version = 11 : i64} {
  func.func @_se_gate_kernel(%arg0: i32, %arg1: i32, %arg2: memref<1x32x128xf32, #tpu.memory_space<vmem>>, %arg3: memref<1x1x128xf32, #tpu.memory_space<vmem>>, %arg4: memref<128x128xf32, #tpu.memory_space<vmem>>, %arg5: memref<1x128xf32, #tpu.memory_space<vmem>>, %arg6: memref<128x128xf32, #tpu.memory_space<vmem>>, %arg7: memref<1x128xf32, #tpu.memory_space<vmem>>, %arg8: memref<1x32x128xf32, #tpu.memory_space<vmem>>) attributes {dimension_semantics = [#tpu.dimension_semantics<parallel>, #tpu.dimension_semantics<parallel>], iteration_bounds = array<i64: 2, 2>, scalar_prefetch = 0 : i64, scratch_operands = 0 : i64, tpu.core_type = #tpu.core_type<tc>, window_params = [{transform_indices = @transform_0, window_bounds = array<i64: 1, 32, 128>}, {transform_indices = @transform_1, window_bounds = array<i64: 1, 1, 128>}, {pipeline_mode = #tpu.pipeline_mode<synchronous>, transform_indices = @transform_2, window_bounds = array<i64: 128, 128>}, {pipeline_mode = #tpu.pipeline_mode<synchronous>, transform_indices = @transform_3, window_bounds = array<i64: 1, 128>}, {pipeline_mode = #tpu.pipeline_mode<synchronous>, transform_indices = @transform_4, window_bounds = array<i64: 128, 128>}, {pipeline_mode = #tpu.pipeline_mode<synchronous>, transform_indices = @transform_5, window_bounds = array<i64: 1, 128>}, {transform_indices = @transform_6, window_bounds = array<i64: 1, 32, 128>}]} {
    %c0 = arith.constant 0 : index
    %c0_0 = arith.constant 0 : index
    %c0_1 = arith.constant 0 : index
    %0 = vector.load %arg3[%c0, %c0_0, %c0_1] : memref<1x1x128xf32, #tpu.memory_space<vmem>>, vector<1x1x128xf32>
    %1 = vector.shape_cast %0 : vector<1x1x128xf32> to vector<1x128xf32>
    %cst = arith.constant 1.562500e-02 : f32
    %2 = vector.broadcast %cst : f32 to vector<1x128xf32>
    %3 = arith.mulf %1, %2 : vector<1x128xf32>
    %c0_2 = arith.constant 0 : index
    %c0_3 = arith.constant 0 : index
    %4 = vector.load %arg4[%c0_2, %c0_3] : memref<128x128xf32, #tpu.memory_space<vmem>>, vector<128x128xf32>
    %cst_4 = arith.constant dense<0.000000e+00> : vector<1x128xf32>
    %5 = tpu.matmul %3, %4, %cst_4 {dimension_numbers = #tpu.dot_dimension_numbers<[1], [0], [0], [1], [0, 0, 1, 1], [], []>} : vector<1x128xf32>, vector<128x128xf32>, vector<1x128xf32> -> vector<1x128xf32>
    %c0_5 = arith.constant 0 : index
    %c0_6 = arith.constant 0 : index
    %6 = vector.load %arg5[%c0_5, %c0_6] : memref<1x128xf32, #tpu.memory_space<vmem>>, vector<1x128xf32>
    %7 = arith.addf %5, %6 : vector<1x128xf32>
    %cst_7 = arith.constant 0.000000e+00 : f32
    %8 = vector.broadcast %cst_7 : f32 to vector<1x128xf32>
    %9 = arith.maximumf %7, %8 : vector<1x128xf32>
    %c0_8 = arith.constant 0 : index
    %c0_9 = arith.constant 0 : index
    %10 = vector.load %arg6[%c0_8, %c0_9] : memref<128x128xf32, #tpu.memory_space<vmem>>, vector<128x128xf32>
    %cst_10 = arith.constant dense<0.000000e+00> : vector<1x128xf32>
    %11 = tpu.matmul %9, %10, %cst_10 {dimension_numbers = #tpu.dot_dimension_numbers<[1], [0], [0], [1], [0, 0, 1, 1], [], []>} : vector<1x128xf32>, vector<128x128xf32>, vector<1x128xf32> -> vector<1x128xf32>
    %c0_11 = arith.constant 0 : index
    %c0_12 = arith.constant 0 : index
    %12 = vector.load %arg7[%c0_11, %c0_12] : memref<1x128xf32, #tpu.memory_space<vmem>>, vector<1x128xf32>
    %13 = arith.addf %11, %12 : vector<1x128xf32>
    %14 = arith.negf %13 : vector<1x128xf32>
    %15 = math.exp %14 : vector<1x128xf32>
    %cst_13 = arith.constant 1.000000e+00 : f32
    %16 = vector.broadcast %cst_13 : f32 to vector<1x128xf32>
    %17 = arith.addf %16, %15 : vector<1x128xf32>
    %18 = arith.divf %16, %17 : vector<1x128xf32>
    %c0_14 = arith.constant 0 : index
    %c0_15 = arith.constant 0 : index
    %c0_16 = arith.constant 0 : index
    %19 = vector.load %arg2[%c0_14, %c0_15, %c0_16] : memref<1x32x128xf32, #tpu.memory_space<vmem>>, vector<1x32x128xf32>
    %20 = vector.shape_cast %19 : vector<1x32x128xf32> to vector<32x128xf32>
    %21 = vector.broadcast %18 : vector<1x128xf32> to vector<32x128xf32>
    %22 = arith.mulf %20, %21 : vector<32x128xf32>
    %c0_17 = arith.constant 0 : index
    %c0_18 = arith.constant 0 : index
    %c0_19 = arith.constant 0 : index
    %23 = vector.load %arg8[%c0_17, %c0_18, %c0_19] : memref<1x32x128xf32, #tpu.memory_space<vmem>>, vector<1x32x128xf32>
    %24 = vector.shape_cast %23 : vector<1x32x128xf32> to vector<32x128xf32>
    %25 = vector.shape_cast %22 : vector<32x128xf32> to vector<1x32x128xf32>
    tpu.vector_store %arg8[%c0_17, %c0_18, %c0_19], %25 {strides = array<i32>} : memref<1x32x128xf32, #tpu.memory_space<vmem>>, vector<1x32x128xf32>,
    return
  }
  func.func @transform_0(%arg0: i32, %arg1: i32) -> (i32, i32, i32) {
    %c0_i32 = arith.constant 0 : i32
    %c0_i32_0 = arith.constant 0 : i32
    return %arg0, %arg1, %c0_i32 : i32, i32, i32
  }
  func.func @transform_1(%arg0: i32, %arg1: i32) -> (i32, i32, i32) {
    %c0_i32 = arith.constant 0 : i32
    %c0_i32_0 = arith.constant 0 : i32
    %c0_i32_1 = arith.constant 0 : i32
    return %arg0, %c0_i32, %c0_i32_0 : i32, i32, i32
  }
  func.func @transform_2(%arg0: i32, %arg1: i32) -> (i32, i32) {
    %c0_i32 = arith.constant 0 : i32
    %c0_i32_0 = arith.constant 0 : i32
    %c0_i32_1 = arith.constant 0 : i32
    return %c0_i32, %c0_i32_0 : i32, i32
  }
  func.func @transform_3(%arg0: i32, %arg1: i32) -> (i32, i32) {
    %c0_i32 = arith.constant 0 : i32
    %c0_i32_0 = arith.constant 0 : i32
    %c0_i32_1 = arith.constant 0 : i32
    return %c0_i32, %c0_i32_0 : i32, i32
  }
  func.func @transform_4(%arg0: i32, %arg1: i32) -> (i32, i32) {
    %c0_i32 = arith.constant 0 : i32
    %c0_i32_0 = arith.constant 0 : i32
    %c0_i32_1 = arith.constant 0 : i32
    return %c0_i32, %c0_i32_0 : i32, i32
  }
  func.func @transform_5(%arg0: i32, %arg1: i32) -> (i32, i32) {
    %c0_i32 = arith.constant 0 : i32
    %c0_i32_0 = arith.constant 0 : i32
    %c0_i32_1 = arith.constant 0 : i32
    return %c0_i32, %c0_i32_0 : i32, i32
  }
  func.func @transform_6(%arg0: i32, %arg1: i32) -> (i32, i32, i32) {
    %c0_i32 = arith.constant 0 : i32
    %c0_i32_0 = arith.constant 0 : i32
    return %arg0, %arg1, %c0_i32 : i32, i32, i32
  }
}

module attributes {stable_mosaic.version = 11 : i64} {
  func.func @_semlp_core_kernel(%arg0: i32, %arg1: i32, %arg2: memref<2x80x128xbf16, #tpu.memory_space<any>>, %arg3: memref<128x128xbf16, #tpu.memory_space<vmem>>, %arg4: memref<1x128xf32, #tpu.memory_space<vmem>>, %arg5: memref<3x3x128xf32, #tpu.memory_space<vmem>>, %arg6: memref<1x128xf32, #tpu.memory_space<vmem>>, %arg7: memref<1x128xf32, #tpu.memory_space<vmem>>, %arg8: memref<128x128xbf16, #tpu.memory_space<vmem>>, %arg9: memref<1x128xf32, #tpu.memory_space<vmem>>, %arg10: memref<1x48x1xf32, #tpu.memory_space<vmem>>, %arg11: memref<2x48x1xf32, #tpu.memory_space<vmem>>, %arg12: memref<1x32x128xf32, #tpu.memory_space<vmem>>, %arg13: memref<1x1x128xf32, #tpu.memory_space<vmem>>, %arg14: memref<2x48x128xbf16, #tpu.memory_space<vmem>>, %arg15: memref<2x!tpu.dma_semaphore, #tpu.memory_space<semaphore_mem>>) attributes {dimension_semantics = [#tpu.dimension_semantics<parallel>, #tpu.dimension_semantics<arbitrary>], iteration_bounds = array<i64: 2, 2>, scalar_prefetch = 0 : i64, scratch_operands = 2 : i64, tpu.core_type = #tpu.core_type<tc>, window_params = [{}, {pipeline_mode = #tpu.pipeline_mode<synchronous>, transform_indices = @transform_1, window_bounds = array<i64: 128, 128>}, {pipeline_mode = #tpu.pipeline_mode<synchronous>, transform_indices = @transform_2, window_bounds = array<i64: 1, 128>}, {pipeline_mode = #tpu.pipeline_mode<synchronous>, transform_indices = @transform_3, window_bounds = array<i64: 3, 3, 128>}, {pipeline_mode = #tpu.pipeline_mode<synchronous>, transform_indices = @transform_4, window_bounds = array<i64: 1, 128>}, {pipeline_mode = #tpu.pipeline_mode<synchronous>, transform_indices = @transform_5, window_bounds = array<i64: 1, 128>}, {pipeline_mode = #tpu.pipeline_mode<synchronous>, transform_indices = @transform_6, window_bounds = array<i64: 128, 128>}, {pipeline_mode = #tpu.pipeline_mode<synchronous>, transform_indices = @transform_7, window_bounds = array<i64: 1, 128>}, {transform_indices = @transform_8, window_bounds = array<i64: 1, 48, 1>}, {pipeline_mode = #tpu.pipeline_mode<synchronous>, transform_indices = @transform_9, window_bounds = array<i64: 2, 48, 1>}, {transform_indices = @transform_10, window_bounds = array<i64: 1, 32, 128>}, {transform_indices = @transform_11, window_bounds = array<i64: 1, 1, 128>}]} {
    %c2_i32 = arith.constant 2 : i32
    %c0_i32 = arith.constant 0 : i32
    %0 = arith.cmpi eq, %c2_i32, %c0_i32 : i32
    %c1_i32 = arith.constant 1 : i32
    %1 = arith.select %0, %c1_i32, %c2_i32 : i32
    %2 = arith.remsi %arg1, %1 : i32
    %c0_i32_0 = arith.constant 0 : i32
    %3 = arith.cmpi ne, %2, %c0_i32_0 : i32
    %c0_i32_1 = arith.constant 0 : i32
    %4 = arith.cmpi slt, %2, %c0_i32_1 : i32
    %c0_i32_2 = arith.constant 0 : i32
    %5 = arith.cmpi slt, %1, %c0_i32_2 : i32
    %6 = arith.xori %4, %5 : i1
    %7 = arith.andi %6, %3 : i1
    %8 = arith.addi %2, %1 : i32
    %9 = arith.select %7, %8, %2 : i32
    %c0_i32_3 = arith.constant 0 : i32
    %10 = arith.cmpi eq, %arg1, %c0_i32_3 : i32
    %11 = arith.extui %10 : i1 to i32
    %c0_i32_4 = arith.constant 0 : i32
    %12 = arith.cmpi ne, %11, %c0_i32_4 : i32
    scf.if %12 {
      %c0_i32_48 = arith.constant 0 : i32
      %c0_i32_49 = arith.constant 0 : i32
      %c0_i32_50 = arith.constant 0 : i32
      %c0_i32_51 = arith.constant 0 : i32
      %146 = tpu.memref_slice %arg2[%arg0, %c0_i32_50, %c0_i32_51] : memref<2x80x128xbf16, #tpu.memory_space<any>> -> memref<1x48x128xbf16, #tpu.memory_space<any>>
      %147 = tpu.memref_squeeze %146 : memref<1x48x128xbf16, #tpu.memory_space<any>> -> memref<48x128xbf16, #tpu.memory_space<any>>
      %c0_i32_52 = arith.constant 0 : i32
      %c0_i32_53 = arith.constant 0 : i32
      %148 = tpu.memref_slice %arg14[%c0_i32_48, %c0_i32_52, %c0_i32_53] : memref<2x48x128xbf16, #tpu.memory_space<vmem>> -> memref<1x48x128xbf16, #tpu.memory_space<vmem>>
      %149 = tpu.memref_squeeze %148 : memref<1x48x128xbf16, #tpu.memory_space<vmem>> -> memref<48x128xbf16, #tpu.memory_space<vmem>>
      %150 = tpu.memref_slice %arg15[%c0_i32_49] : memref<2x!tpu.dma_semaphore, #tpu.memory_space<semaphore_mem>> -> memref<1x!tpu.dma_semaphore, #tpu.memory_space<semaphore_mem>>
      %151 = tpu.memref_squeeze %150 : memref<1x!tpu.dma_semaphore, #tpu.memory_space<semaphore_mem>> -> memref<!tpu.dma_semaphore, #tpu.memory_space<semaphore_mem>>
      tpu.enqueue_dma source(%147 : memref<48x128xbf16, #tpu.memory_space<any>>) target(%149 : memref<48x128xbf16, #tpu.memory_space<vmem>>) target_semaphore(%151 : memref<!tpu.dma_semaphore, #tpu.memory_space<semaphore_mem>>)
    } else {
    }
    %c32_i32 = arith.constant 32 : i32
    %13 = arith.muli %arg1, %c32_i32 : i32
    %c0_i32_5 = arith.constant 0 : i32
    %14 = tpu.memref_slice %arg2[%arg0, %13, %c0_i32_5] : memref<2x80x128xbf16, #tpu.memory_space<any>> -> memref<1x48x128xbf16, #tpu.memory_space<any>>
    %15 = tpu.memref_squeeze %14 : memref<1x48x128xbf16, #tpu.memory_space<any>> -> memref<48x128xbf16, #tpu.memory_space<any>>
    %c0_i32_6 = arith.constant 0 : i32
    %c0_i32_7 = arith.constant 0 : i32
    %16 = tpu.memref_slice %arg14[%9, %c0_i32_6, %c0_i32_7] : memref<2x48x128xbf16, #tpu.memory_space<vmem>> -> memref<1x48x128xbf16, #tpu.memory_space<vmem>>
    %17 = tpu.memref_squeeze %16 : memref<1x48x128xbf16, #tpu.memory_space<vmem>> -> memref<48x128xbf16, #tpu.memory_space<vmem>>
    %18 = tpu.memref_slice %arg15[%9] : memref<2x!tpu.dma_semaphore, #tpu.memory_space<semaphore_mem>> -> memref<1x!tpu.dma_semaphore, #tpu.memory_space<semaphore_mem>>
    %19 = tpu.memref_squeeze %18 : memref<1x!tpu.dma_semaphore, #tpu.memory_space<semaphore_mem>> -> memref<!tpu.dma_semaphore, #tpu.memory_space<semaphore_mem>>
    tpu.wait_dma2 semaphore(%19 : memref<!tpu.dma_semaphore, #tpu.memory_space<semaphore_mem>>) src(%15 : memref<48x128xbf16, #tpu.memory_space<any>>) dst(%17 : memref<48x128xbf16, #tpu.memory_space<vmem>>)
    %c1_i32_8 = arith.constant 1 : i32
    %20 = arith.addi %arg1, %c1_i32_8 : i32
    %c2_i32_9 = arith.constant 2 : i32
    %21 = arith.cmpi slt, %20, %c2_i32_9 : i32
    %22 = arith.extui %21 : i1 to i32
    %c0_i32_10 = arith.constant 0 : i32
    %23 = arith.cmpi ne, %22, %c0_i32_10 : i32
    scf.if %23 {
      %c1_i32_48 = arith.constant 1 : i32
      %146 = arith.addi %arg1, %c1_i32_48 : i32
      %c1_i32_49 = arith.constant 1 : i32
      %147 = arith.subi %c1_i32_49, %9 : i32
      %c32_i32_50 = arith.constant 32 : i32
      %148 = arith.muli %146, %c32_i32_50 : i32
      %c0_i32_51 = arith.constant 0 : i32
      %149 = tpu.memref_slice %arg2[%arg0, %148, %c0_i32_51] : memref<2x80x128xbf16, #tpu.memory_space<any>> -> memref<1x48x128xbf16, #tpu.memory_space<any>>
      %150 = tpu.memref_squeeze %149 : memref<1x48x128xbf16, #tpu.memory_space<any>> -> memref<48x128xbf16, #tpu.memory_space<any>>
      %c0_i32_52 = arith.constant 0 : i32
      %c0_i32_53 = arith.constant 0 : i32
      %151 = tpu.memref_slice %arg14[%147, %c0_i32_52, %c0_i32_53] : memref<2x48x128xbf16, #tpu.memory_space<vmem>> -> memref<1x48x128xbf16, #tpu.memory_space<vmem>>
      %152 = tpu.memref_squeeze %151 : memref<1x48x128xbf16, #tpu.memory_space<vmem>> -> memref<48x128xbf16, #tpu.memory_space<vmem>>
      %153 = tpu.memref_slice %arg15[%147] : memref<2x!tpu.dma_semaphore, #tpu.memory_space<semaphore_mem>> -> memref<1x!tpu.dma_semaphore, #tpu.memory_space<semaphore_mem>>
      %154 = tpu.memref_squeeze %153 : memref<1x!tpu.dma_semaphore, #tpu.memory_space<semaphore_mem>> -> memref<!tpu.dma_semaphore, #tpu.memory_space<semaphore_mem>>
      tpu.enqueue_dma source(%150 : memref<48x128xbf16, #tpu.memory_space<any>>) target(%152 : memref<48x128xbf16, #tpu.memory_space<vmem>>) target_semaphore(%154 : memref<!tpu.dma_semaphore, #tpu.memory_space<semaphore_mem>>)
    } else {
    }
    %24 = arith.index_cast %9 : i32 to index
    %c0 = arith.constant 0 : index
    %c0_11 = arith.constant 0 : index
    %25 = vector.load %arg14[%24, %c0, %c0_11] : memref<2x48x128xbf16, #tpu.memory_space<vmem>>, vector<1x48x128xbf16>
    %26 = vector.shape_cast %25 : vector<1x48x128xbf16> to vector<48x128xbf16>
    %c0_12 = arith.constant 0 : index
    %c0_13 = arith.constant 0 : index
    %27 = vector.load %arg3[%c0_12, %c0_13] : memref<128x128xbf16, #tpu.memory_space<vmem>>, vector<128x128xbf16>
    %cst = arith.constant dense<0.000000e+00> : vector<48x128xf32>
    %28 = tpu.matmul %26, %27, %cst {dimension_numbers = #tpu.dot_dimension_numbers<[1], [0], [0], [1], [0, 0, 1, 1], [], []>} : vector<48x128xbf16>, vector<128x128xbf16>, vector<48x128xf32> -> vector<48x128xf32>
    %c0_14 = arith.constant 0 : index
    %c0_15 = arith.constant 0 : index
    %29 = vector.load %arg4[%c0_14, %c0_15] : memref<1x128xf32, #tpu.memory_space<vmem>>, vector<1x128xf32>
    %30 = vector.broadcast %29 : vector<1x128xf32> to vector<48x128xf32>
    %31 = arith.addf %28, %30 : vector<48x128xf32>
    %c0_16 = arith.constant 0 : index
    %c0_17 = arith.constant 0 : index
    %c0_18 = arith.constant 0 : index
    %32 = vector.load %arg10[%c0_16, %c0_17, %c0_18] : memref<1x48x1xf32, #tpu.memory_space<vmem>>, vector<1x48x1xf32>
    %33 = vector.shape_cast %32 : vector<1x48x1xf32> to vector<48x1xf32>
    %34 = vector.broadcast %33 : vector<48x1xf32> to vector<48x128xf32>
    %35 = arith.mulf %31, %34 : vector<48x128xf32>
    %c0_19 = arith.constant 0 : index
    %c0_20 = arith.constant 0 : index
    %c0_21 = arith.constant 0 : index
    %36 = vector.load %arg11[%c0_19, %c0_20, %c0_21] : memref<2x48x1xf32, #tpu.memory_space<vmem>>, vector<2x48x1xf32>
    %c1_i32_22 = arith.constant 1 : i32
    %37 = tpu.dynamic_rotate %35 by %c1_i32_22 dim 0 : vector<48x128xf32>, i32 -> vector<48x128xf32>
    %38 = vector.extract_strided_slice %36 {offsets = [0, 0, 0], sizes = [1, 48, 1], strides = [1, 1, 1]} : vector<2x48x1xf32> to vector<1x48x1xf32>
    %39 = vector.shape_cast %38 : vector<1x48x1xf32> to vector<48x1xf32>
    %40 = vector.broadcast %39 : vector<48x1xf32> to vector<48x128xf32>
    %41 = arith.mulf %37, %40 : vector<48x128xf32>
    %c47_i32 = arith.constant 47 : i32
    %42 = tpu.dynamic_rotate %35 by %c47_i32 dim 0 : vector<48x128xf32>, i32 -> vector<48x128xf32>
    %43 = vector.extract_strided_slice %36 {offsets = [1, 0, 0], sizes = [1, 48, 1], strides = [1, 1, 1]} : vector<2x48x1xf32> to vector<1x48x1xf32>
    %44 = vector.shape_cast %43 : vector<1x48x1xf32> to vector<48x1xf32>
    %45 = vector.broadcast %44 : vector<48x1xf32> to vector<48x128xf32>
    %46 = arith.mulf %42, %45 : vector<48x128xf32>
    %47 = vector.shape_cast %41 : vector<48x128xf32> to vector<6x8x128xf32>
    %48 = vector.shape_cast %35 : vector<48x128xf32> to vector<6x8x128xf32>
    %49 = vector.shape_cast %46 : vector<48x128xf32> to vector<6x8x128xf32>
    %c0_23 = arith.constant 0 : index
    %c0_24 = arith.constant 0 : index
    %c0_25 = arith.constant 0 : index
    %50 = vector.load %arg5[%c0_23, %c0_24, %c0_25] : memref<3x3x128xf32, #tpu.memory_space<vmem>>, vector<3x3x128xf32>
    %cst_26 = arith.constant 0.000000e+00 : f32
    %51 = vector.broadcast %cst_26 : f32 to vector<4x8x128xf32>
    %c0_27 = arith.constant 0 : index
    %c0_28 = arith.constant 0 : index
    %52 = vector.load %arg6[%c0_27, %c0_28] : memref<1x128xf32, #tpu.memory_space<vmem>>, vector<1x128xf32>
    %53 = vector.shape_cast %52 : vector<1x128xf32> to vector<1x1x128xf32>
    %54 = vector.broadcast %53 : vector<1x1x128xf32> to vector<4x8x128xf32>
    %55 = arith.addf %51, %54 : vector<4x8x128xf32>
    %56 = vector.extract_strided_slice %47 {offsets = [0, 0, 0], sizes = [4, 8, 128], strides = [1, 1, 1]} : vector<6x8x128xf32> to vector<4x8x128xf32>
    %57 = vector.extract_strided_slice %50 {offsets = [0, 0, 0], sizes = [1, 1, 128], strides = [1, 1, 1]} : vector<3x3x128xf32> to vector<1x1x128xf32>
    %58 = vector.shape_cast %57 : vector<1x1x128xf32> to vector<128xf32>
    %59 = vector.shape_cast %58 : vector<128xf32> to vector<1x1x128xf32>
    %60 = vector.broadcast %59 : vector<1x1x128xf32> to vector<4x8x128xf32>
    %61 = arith.mulf %56, %60 : vector<4x8x128xf32>
    %62 = arith.addf %55, %61 : vector<4x8x128xf32>
    %63 = vector.extract_strided_slice %48 {offsets = [0, 0, 0], sizes = [4, 8, 128], strides = [1, 1, 1]} : vector<6x8x128xf32> to vector<4x8x128xf32>
    %64 = vector.extract_strided_slice %50 {offsets = [0, 1, 0], sizes = [1, 1, 128], strides = [1, 1, 1]} : vector<3x3x128xf32> to vector<1x1x128xf32>
    %65 = vector.shape_cast %64 : vector<1x1x128xf32> to vector<128xf32>
    %66 = vector.shape_cast %65 : vector<128xf32> to vector<1x1x128xf32>
    %67 = vector.broadcast %66 : vector<1x1x128xf32> to vector<4x8x128xf32>
    %68 = arith.mulf %63, %67 : vector<4x8x128xf32>
    %69 = arith.addf %62, %68 : vector<4x8x128xf32>
    %70 = vector.extract_strided_slice %49 {offsets = [0, 0, 0], sizes = [4, 8, 128], strides = [1, 1, 1]} : vector<6x8x128xf32> to vector<4x8x128xf32>
    %71 = vector.extract_strided_slice %50 {offsets = [0, 2, 0], sizes = [1, 1, 128], strides = [1, 1, 1]} : vector<3x3x128xf32> to vector<1x1x128xf32>
    %72 = vector.shape_cast %71 : vector<1x1x128xf32> to vector<128xf32>
    %73 = vector.shape_cast %72 : vector<128xf32> to vector<1x1x128xf32>
    %74 = vector.broadcast %73 : vector<1x1x128xf32> to vector<4x8x128xf32>
    %75 = arith.mulf %70, %74 : vector<4x8x128xf32>
    %76 = arith.addf %69, %75 : vector<4x8x128xf32>
    %77 = vector.extract_strided_slice %47 {offsets = [1, 0, 0], sizes = [4, 8, 128], strides = [1, 1, 1]} : vector<6x8x128xf32> to vector<4x8x128xf32>
    %78 = vector.extract_strided_slice %50 {offsets = [1, 0, 0], sizes = [1, 1, 128], strides = [1, 1, 1]} : vector<3x3x128xf32> to vector<1x1x128xf32>
    %79 = vector.shape_cast %78 : vector<1x1x128xf32> to vector<128xf32>
    %80 = vector.shape_cast %79 : vector<128xf32> to vector<1x1x128xf32>
    %81 = vector.broadcast %80 : vector<1x1x128xf32> to vector<4x8x128xf32>
    %82 = arith.mulf %77, %81 : vector<4x8x128xf32>
    %83 = arith.addf %76, %82 : vector<4x8x128xf32>
    %84 = vector.extract_strided_slice %48 {offsets = [1, 0, 0], sizes = [4, 8, 128], strides = [1, 1, 1]} : vector<6x8x128xf32> to vector<4x8x128xf32>
    %85 = vector.extract_strided_slice %50 {offsets = [1, 1, 0], sizes = [1, 1, 128], strides = [1, 1, 1]} : vector<3x3x128xf32> to vector<1x1x128xf32>
    %86 = vector.shape_cast %85 : vector<1x1x128xf32> to vector<128xf32>
    %87 = vector.shape_cast %86 : vector<128xf32> to vector<1x1x128xf32>
    %88 = vector.broadcast %87 : vector<1x1x128xf32> to vector<4x8x128xf32>
    %89 = arith.mulf %84, %88 : vector<4x8x128xf32>
    %90 = arith.addf %83, %89 : vector<4x8x128xf32>
    %91 = vector.extract_strided_slice %49 {offsets = [1, 0, 0], sizes = [4, 8, 128], strides = [1, 1, 1]} : vector<6x8x128xf32> to vector<4x8x128xf32>
    %92 = vector.extract_strided_slice %50 {offsets = [1, 2, 0], sizes = [1, 1, 128], strides = [1, 1, 1]} : vector<3x3x128xf32> to vector<1x1x128xf32>
    %93 = vector.shape_cast %92 : vector<1x1x128xf32> to vector<128xf32>
    %94 = vector.shape_cast %93 : vector<128xf32> to vector<1x1x128xf32>
    %95 = vector.broadcast %94 : vector<1x1x128xf32> to vector<4x8x128xf32>
    %96 = arith.mulf %91, %95 : vector<4x8x128xf32>
    %97 = arith.addf %90, %96 : vector<4x8x128xf32>
    %98 = vector.extract_strided_slice %47 {offsets = [2, 0, 0], sizes = [4, 8, 128], strides = [1, 1, 1]} : vector<6x8x128xf32> to vector<4x8x128xf32>
    %99 = vector.extract_strided_slice %50 {offsets = [2, 0, 0], sizes = [1, 1, 128], strides = [1, 1, 1]} : vector<3x3x128xf32> to vector<1x1x128xf32>
    %100 = vector.shape_cast %99 : vector<1x1x128xf32> to vector<128xf32>
    %101 = vector.shape_cast %100 : vector<128xf32> to vector<1x1x128xf32>
    %102 = vector.broadcast %101 : vector<1x1x128xf32> to vector<4x8x128xf32>
    %103 = arith.mulf %98, %102 : vector<4x8x128xf32>
    %104 = arith.addf %97, %103 : vector<4x8x128xf32>
    %105 = vector.extract_strided_slice %48 {offsets = [2, 0, 0], sizes = [4, 8, 128], strides = [1, 1, 1]} : vector<6x8x128xf32> to vector<4x8x128xf32>
    %106 = vector.extract_strided_slice %50 {offsets = [2, 1, 0], sizes = [1, 1, 128], strides = [1, 1, 1]} : vector<3x3x128xf32> to vector<1x1x128xf32>
    %107 = vector.shape_cast %106 : vector<1x1x128xf32> to vector<128xf32>
    %108 = vector.shape_cast %107 : vector<128xf32> to vector<1x1x128xf32>
    %109 = vector.broadcast %108 : vector<1x1x128xf32> to vector<4x8x128xf32>
    %110 = arith.mulf %105, %109 : vector<4x8x128xf32>
    %111 = arith.addf %104, %110 : vector<4x8x128xf32>
    %112 = vector.extract_strided_slice %49 {offsets = [2, 0, 0], sizes = [4, 8, 128], strides = [1, 1, 1]} : vector<6x8x128xf32> to vector<4x8x128xf32>
    %113 = vector.extract_strided_slice %50 {offsets = [2, 2, 0], sizes = [1, 1, 128], strides = [1, 1, 1]} : vector<3x3x128xf32> to vector<1x1x128xf32>
    %114 = vector.shape_cast %113 : vector<1x1x128xf32> to vector<128xf32>
    %115 = vector.shape_cast %114 : vector<128xf32> to vector<1x1x128xf32>
    %116 = vector.broadcast %115 : vector<1x1x128xf32> to vector<4x8x128xf32>
    %117 = arith.mulf %112, %116 : vector<4x8x128xf32>
    %118 = arith.addf %111, %117 : vector<4x8x128xf32>
    %c0_29 = arith.constant 0 : index
    %c0_30 = arith.constant 0 : index
    %119 = vector.load %arg7[%c0_29, %c0_30] : memref<1x128xf32, #tpu.memory_space<vmem>>, vector<1x128xf32>
    %120 = vector.shape_cast %119 : vector<1x128xf32> to vector<1x1x128xf32>
    %121 = vector.broadcast %120 : vector<1x1x128xf32> to vector<4x8x128xf32>
    %122 = arith.mulf %121, %118 : vector<4x8x128xf32>
    %123 = vector.extract_strided_slice %48 {offsets = [1, 0, 0], sizes = [4, 8, 128], strides = [1, 1, 1]} : vector<6x8x128xf32> to vector<4x8x128xf32>
    %124 = arith.addf %122, %123 : vector<4x8x128xf32>
    %125 = vector.shape_cast %124 : vector<4x8x128xf32> to vector<32x128xf32>
    %126 = arith.truncf %125 : vector<32x128xf32> to vector<32x128xbf16>
    %c0_31 = arith.constant 0 : index
    %c0_32 = arith.constant 0 : index
    %127 = vector.load %arg8[%c0_31, %c0_32] : memref<128x128xbf16, #tpu.memory_space<vmem>>, vector<128x128xbf16>
    %cst_33 = arith.constant dense<0.000000e+00> : vector<32x128xf32>
    %128 = tpu.matmul %126, %127, %cst_33 {dimension_numbers = #tpu.dot_dimension_numbers<[1], [0], [0], [1], [0, 0, 1, 1], [], []>} : vector<32x128xbf16>, vector<128x128xbf16>, vector<32x128xf32> -> vector<32x128xf32>
    %c0_34 = arith.constant 0 : index
    %c0_35 = arith.constant 0 : index
    %129 = vector.load %arg9[%c0_34, %c0_35] : memref<1x128xf32, #tpu.memory_space<vmem>>, vector<1x128xf32>
    %130 = vector.broadcast %129 : vector<1x128xf32> to vector<32x128xf32>
    %131 = arith.addf %128, %130 : vector<32x128xf32>
    %c0_36 = arith.constant 0 : index
    %c0_37 = arith.constant 0 : index
    %c0_38 = arith.constant 0 : index
    %132 = vector.load %arg12[%c0_36, %c0_37, %c0_38] : memref<1x32x128xf32, #tpu.memory_space<vmem>>, vector<1x32x128xf32>
    %133 = vector.shape_cast %132 : vector<1x32x128xf32> to vector<32x128xf32>
    %134 = vector.shape_cast %131 : vector<32x128xf32> to vector<1x32x128xf32>
    tpu.vector_store %arg12[%c0_36, %c0_37, %c0_38], %134 {strides = array<i32>} : memref<1x32x128xf32, #tpu.memory_space<vmem>>, vector<1x32x128xf32>,
    %c0_i32_39 = arith.constant 0 : i32
    %135 = arith.cmpi eq, %arg1, %c0_i32_39 : i32
    %136 = arith.extui %135 : i1 to i32
    %c0_i32_40 = arith.constant 0 : i32
    %137 = arith.cmpi ne, %136, %c0_i32_40 : i32
    scf.if %137 {
      %cst_48 = arith.constant 0.000000e+00 : f32
      %146 = vector.broadcast %cst_48 : f32 to vector<1x1x128xf32>
      %c0_49 = arith.constant 0 : index
      %c0_50 = arith.constant 0 : index
      %c0_51 = arith.constant 0 : index
      %147 = vector.load %arg13[%c0_49, %c0_50, %c0_51] : memref<1x1x128xf32, #tpu.memory_space<vmem>>, vector<1x1x128xf32>
      tpu.vector_store %arg13[%c0_49, %c0_50, %c0_51], %146 {strides = array<i32>} : memref<1x1x128xf32, #tpu.memory_space<vmem>>, vector<1x1x128xf32>,
    } else {
    }
    %c0_41 = arith.constant 0 : index
    %c0_42 = arith.constant 0 : index
    %c0_43 = arith.constant 0 : index
    %138 = vector.load %arg13[%c0_41, %c0_42, %c0_43] : memref<1x1x128xf32, #tpu.memory_space<vmem>>, vector<1x1x128xf32>
    %139 = vector.shape_cast %138 : vector<1x1x128xf32> to vector<1x128xf32>
    %cst_44 = arith.constant dense<0.000000e+00> : vector<128xf32>
    %140 = vector.multi_reduction <add>, %131, %cst_44 [0] : vector<32x128xf32> to vector<128xf32>
    %141 = vector.shape_cast %140 : vector<128xf32> to vector<1x128xf32>
    %142 = arith.addf %139, %141 : vector<1x128xf32>
    %c0_45 = arith.constant 0 : index
    %c0_46 = arith.constant 0 : index
    %c0_47 = arith.constant 0 : index
    %143 = vector.load %arg13[%c0_45, %c0_46, %c0_47] : memref<1x1x128xf32, #tpu.memory_space<vmem>>, vector<1x1x128xf32>
    %144 = vector.shape_cast %143 : vector<1x1x128xf32> to vector<1x128xf32>
    %145 = vector.shape_cast %142 : vector<1x128xf32> to vector<1x1x128xf32>
    tpu.vector_store %arg13[%c0_45, %c0_46, %c0_47], %145 {strides = array<i32>} : memref<1x1x128xf32, #tpu.memory_space<vmem>>, vector<1x1x128xf32>,
    return
  }
  func.func @transform_1(%arg0: i32, %arg1: i32) -> (i32, i32) {
    %c0_i32 = arith.constant 0 : i32
    %c0_i32_0 = arith.constant 0 : i32
    %c0_i32_1 = arith.constant 0 : i32
    return %c0_i32, %c0_i32_0 : i32, i32
  }
  func.func @transform_2(%arg0: i32, %arg1: i32) -> (i32, i32) {
    %c0_i32 = arith.constant 0 : i32
    %c0_i32_0 = arith.constant 0 : i32
    %c0_i32_1 = arith.constant 0 : i32
    return %c0_i32, %c0_i32_0 : i32, i32
  }
  func.func @transform_3(%arg0: i32, %arg1: i32) -> (i32, i32, i32) {
    %c0_i32 = arith.constant 0 : i32
    %c0_i32_0 = arith.constant 0 : i32
    %c0_i32_1 = arith.constant 0 : i32
    %c0_i32_2 = arith.constant 0 : i32
    return %c0_i32, %c0_i32_0, %c0_i32_1 : i32, i32, i32
  }
  func.func @transform_4(%arg0: i32, %arg1: i32) -> (i32, i32) {
    %c0_i32 = arith.constant 0 : i32
    %c0_i32_0 = arith.constant 0 : i32
    %c0_i32_1 = arith.constant 0 : i32
    return %c0_i32, %c0_i32_0 : i32, i32
  }
  func.func @transform_5(%arg0: i32, %arg1: i32) -> (i32, i32) {
    %c0_i32 = arith.constant 0 : i32
    %c0_i32_0 = arith.constant 0 : i32
    %c0_i32_1 = arith.constant 0 : i32
    return %c0_i32, %c0_i32_0 : i32, i32
  }
  func.func @transform_6(%arg0: i32, %arg1: i32) -> (i32, i32) {
    %c0_i32 = arith.constant 0 : i32
    %c0_i32_0 = arith.constant 0 : i32
    %c0_i32_1 = arith.constant 0 : i32
    return %c0_i32, %c0_i32_0 : i32, i32
  }
  func.func @transform_7(%arg0: i32, %arg1: i32) -> (i32, i32) {
    %c0_i32 = arith.constant 0 : i32
    %c0_i32_0 = arith.constant 0 : i32
    %c0_i32_1 = arith.constant 0 : i32
    return %c0_i32, %c0_i32_0 : i32, i32
  }
  func.func @transform_8(%arg0: i32, %arg1: i32) -> (i32, i32, i32) {
    %c0_i32 = arith.constant 0 : i32
    %c0_i32_0 = arith.constant 0 : i32
    %c0_i32_1 = arith.constant 0 : i32
    return %arg1, %c0_i32, %c0_i32_0 : i32, i32, i32
  }
  func.func @transform_9(%arg0: i32, %arg1: i32) -> (i32, i32, i32) {
    %c0_i32 = arith.constant 0 : i32
    %c0_i32_0 = arith.constant 0 : i32
    %c0_i32_1 = arith.constant 0 : i32
    %c0_i32_2 = arith.constant 0 : i32
    return %c0_i32, %c0_i32_0, %c0_i32_1 : i32, i32, i32
  }
  func.func @transform_10(%arg0: i32, %arg1: i32) -> (i32, i32, i32) {
    %c0_i32 = arith.constant 0 : i32
    %c0_i32_0 = arith.constant 0 : i32
    return %arg0, %arg1, %c0_i32 : i32, i32, i32
  }
  func.func @transform_11(%arg0: i32, %arg1: i32) -> (i32, i32, i32) {
    %c0_i32 = arith.constant 0 : i32
    %c0_i32_0 = arith.constant 0 : i32
    %c0_i32_1 = arith.constant 0 : i32
    return %arg0, %c0_i32, %c0_i32_0 : i32, i32, i32
  }
}

</mosaic_0001>

<llo_original>
// kernel: tile.13
$region0: #{tile.13}
  #allocation0 [shape = 's32[1]{0}', space=sflag, size = 0x4, scoped, tag = 'scoped memory for tile.13']
  %s0 = inlined_call_operand.vmem [shape: pred[8], index: 0, kind: input, shape index: {}]
  %s1 = inlined_call_operand.vmem [shape: pred[6,8], index: 1, kind: output, shape index: {}]
  // Predicated region
  $region2: #{tile.13} parent=0 // pred_check
    _
  $region3: #{tile.13} parent=0 // pred_check_branch
    %3 = sbr.rel (0) target = $region5
  $region4: #{tile.13} parent=0 // pred_region
    _
  $region5: #{tile.13} parent=0 // pred_fallthru
    _
  %v4 = vld [vmem:[%s0] ss:$0 sm:$0xff]
  %v6 = vshra.s32 %v4, 0
  %v7 = vand.u32 %v6, 255
  %v8 = vpack.c.b16 0, %v7
  %v9 = vpack.c.b8 0, %v8
  %s11 = ssub.s32 4, 1
  %12 = vst [vmem:[%s1] sm:%s11] %v9

// kernel: _lambda_.3
$region0: #{_lambda_.3}
  #allocation0 [shape = 'u32[]', space=smem, size = 0x4, offset = 0x4, fixed_abs, tag = 'smem constant byte address 0x4 - core index']
  #allocation1 [shape = 'u32[72,128]{1,0:T(1,128)}', space=vmem, size = 0x9000, scoped, tag = 'internal scratch']
  %s0 = inlined_call_operand.vmem [shape: f32[2,64,128], index: 0, kind: input, shape index: {}]
  %s1 = inlined_call_operand.vmem [shape: f32[2,1,128], index: 1, kind: input, shape index: {}]
  %s2 = inlined_call_operand.vmem [shape: f32[128,128], index: 2, kind: input, shape index: {}]
  %s3 = inlined_call_operand.vmem [shape: f32[1,128], index: 3, kind: input, shape index: {}]
  %s4 = inlined_call_operand.vmem [shape: f32[128,128], index: 4, kind: input, shape index: {}]
  %s5 = inlined_call_operand.vmem [shape: f32[1,128], index: 5, kind: input, shape index: {}]
  %s6 = inlined_call_operand.vmem [shape: f32[2,64,128], index: 6, kind: output, shape index: {}]
  %s7 = sld [smem:[#allocation0]]
  $region57: #{_lambda_.3} parent=0
    _
  %s9 = ssub.s32 1, %s7
  %s10 = scalar_select 0, %s9, %s7
  loop: start=0, step=1, limit=6
  $region2: #{_lambda_.3} parent=0 // loop_pre_header
    _
  $region3: #{_lambda_.3} parent=0 // loop_header
    %s12 = sphi 0, %s16
    %p13 = scmp.ge.s32.totalorder %s12, 6
    %s19 = sphi 0, %s31
    %s20 = sphi 0, %s27
    %s21 = sphi 0, %s19
    %s22 = sphi 0, %s20
    %s23 = sphi 0, %s21
    %s24 = sphi 0, %s22
    %s36 = sphi 0, %s38
    %s39 = sphi 0, %s36
    %s40 = sphi 0, %s39
    %s56 = sphi 0, %s40
    %s62 = sphi 0, %s64
    %s65 = sphi 0, %s62
    %s66 = sphi 0, %s65
    %s82 = sphi 0, %s66
    %s86 = sphi 0, %s86
    %s88 = sphi 0, %s86
    %s89 = sphi 0, %s88
    %s103 = sphi 0, %s89
    %s107 = sphi 0, %s107
    %s109 = sphi 0, %s107
    %s110 = sphi 0, %s109
    %s124 = sphi 0, %s110
    %s128 = sphi 0, %s128
    %s130 = sphi 0, %s128
    %s131 = sphi 0, %s130
    %s145 = sphi 0, %s131
    %s149 = sphi 0, %s149
    %s151 = sphi 0, %s149
    %s152 = sphi 0, %s151
    %s166 = sphi 0, %s152
    %s174 = sphi 0, %s176
    %s177 = sphi 0, %s174
    %s178 = sphi 0, %s177
    %s194 = sphi 0, %s178
  $region4: #{_lambda_.3} parent=0 // loop_header_branch
    %15 = sbr.rel (%p13) target = $region8
  $region5: #{_lambda_.3} parent=0 // loop_body
    %s17 = ssub.s32 %s12, 1
    %s18 = ssub.s32 %s12, 2
    %s25 = sadd.s32 1, %s20
    %p26 = scmp.ge.s32.totalorder %s25, 2
    %s27 = scalar_select %p26, 0, %s25
    %s28 = sadd.s32 1, %s19
    %s29 = scalar_select %p26, %s28, %s19
    %p30 = scmp.ge.s32.totalorder %s29, 2
    %s31 = scalar_select %p30, 0, %s29
    %s32 = ssub.s32 %s19, %s31
    %s33 = ssub.s32 %s20, %s27
    %s34 = sor.u32 %s32, %s33
    %p35 = scmp.eq.s32.totalorder %s34, 0
    %s37 = sadd.s32 %s36, 1
    %s38 = scalar_select %p35, %s36, %s37
    %p41 = pneg %p35
    %p42 = scmp.eq.s32.totalorder %s12, 3
    %p43 = por %p41, %p42
    %p44 = scmp.ne.s32.totalorder %s36, %s39
    %p45 = scmp.eq.s32.totalorder %s12, 0
    %p46 = por %p44, %p45
    %p47 = scmp.ne.s32.totalorder %s36, %s39
    %p48 = scmp.eq.s32.totalorder %s17, 3
    %p49 = por %p47, %p48
    %p50 = scmp.ne.s32.totalorder %s39, %s40
    %p51 = scmp.eq.s32.totalorder %s17, 0
    %p52 = por %p50, %p51
    %p53 = scmp.ne.s32.totalorder %s39, %s40
    %p54 = scmp.eq.s32.totalorder %s18, 3
    %p55 = por %p53, %p54
    %p57 = scmp.ne.s32.totalorder %s40, %s56
    %p58 = scmp.eq.s32.totalorder %s18, 0
    %p59 = por %p57, %p58
    %s60 = ssub.s32 %s19, %s31
    %p61 = scmp.eq.s32.totalorder %s60, 0
    %s63 = sadd.s32 %s62, 1
    %s64 = scalar_select %p61, %s62, %s63
    %p67 = pneg %p61
    %p68 = scmp.eq.s32.totalorder %s12, 3
    %p69 = por %p67, %p68
    %p70 = scmp.ne.s32.totalorder %s62, %s65
    %p71 = scmp.eq.s32.totalorder %s12, 0
    %p72 = por %p70, %p71
    %p73 = scmp.ne.s32.totalorder %s62, %s65
    %p74 = scmp.eq.s32.totalorder %s17, 3
    %p75 = por %p73, %p74
    %p76 = scmp.ne.s32.totalorder %s65, %s66
    %p77 = scmp.eq.s32.totalorder %s17, 0
    %p78 = por %p76, %p77
    %p79 = scmp.ne.s32.totalorder %s65, %s66
    %p80 = scmp.eq.s32.totalorder %s18, 3
    %p81 = por %p79, %p80
    %p83 = scmp.ne.s32.totalorder %s66, %s82
    %p84 = scmp.eq.s32.totalorder %s18, 0
    %p85 = por %p83, %p84
    %s87 = sadd.s32 %s86, 1
    %p90 = scmp.eq.s32.totalorder %s12, 3
    %p91 = scmp.ne.s32.totalorder %s86, %s88
    %p92 = scmp.eq.s32.totalorder %s12, 0
    %p93 = por %p91, %p92
    %p94 = scmp.ne.s32.totalorder %s86, %s88
    %p95 = scmp.eq.s32.totalorder %s17, 3
    %p96 = por %p94, %p95
    %p97 = scmp.ne.s32.totalorder %s88, %s89
    %p98 = scmp.eq.s32.totalorder %s17, 0
    %p99 = por %p97, %p98
    %p100 = scmp.ne.s32.totalorder %s88, %s89
    %p101 = scmp.eq.s32.totalorder %s18, 3
    %p102 = por %p100, %p101
    %p104 = scmp.ne.s32.totalorder %s89, %s103
    %p105 = scmp.eq.s32.totalorder %s18, 0
    %p106 = por %p104, %p105
    %s108 = sadd.s32 %s107, 1
    %p111 = scmp.eq.s32.totalorder %s12, 3
    %p112 = scmp.ne.s32.totalorder %s107, %s109
    %p113 = scmp.eq.s32.totalorder %s12, 0
    %p114 = por %p112, %p113
    %p115 = scmp.ne.s32.totalorder %s107, %s109
    %p116 = scmp.eq.s32.totalorder %s17, 3
    %p117 = por %p115, %p116
    %p118 = scmp.ne.s32.totalorder %s109, %s110
    %p119 = scmp.eq.s32.totalorder %s17, 0
    %p120 = por %p118, %p119
    %p121 = scmp.ne.s32.totalorder %s109, %s110
    %p122 = scmp.eq.s32.totalorder %s18, 3
    %p123 = por %p121, %p122
    %p125 = scmp.ne.s32.totalorder %s110, %s124
    %p126 = scmp.eq.s32.totalorder %s18, 0
    %p127 = por %p125, %p126
    %s129 = sadd.s32 %s128, 1
    %p132 = scmp.eq.s32.totalorder %s12, 3
    %p133 = scmp.ne.s32.totalorder %s128, %s130
    %p134 = scmp.eq.s32.totalorder %s12, 0
    %p135 = por %p133, %p134
    %p136 = scmp.ne.s32.totalorder %s128, %s130
    %p137 = scmp.eq.s32.totalorder %s17, 3
    %p138 = por %p136, %p137
    %p139 = scmp.ne.s32.totalorder %s130, %s131
    %p140 = scmp.eq.s32.totalorder %s17, 0
    %p141 = por %p139, %p140
    %p142 = scmp.ne.s32.totalorder %s130, %s131
    %p143 = scmp.eq.s32.totalorder %s18, 3
    %p144 = por %p142, %p143
    %p146 = scmp.ne.s32.totalorder %s131, %s145
    %p147 = scmp.eq.s32.totalorder %s18, 0
    %p148 = por %p146, %p147
    %s150 = sadd.s32 %s149, 1
    %p153 = scmp.eq.s32.totalorder %s12, 3
    %p154 = scmp.ne.s32.totalorder %s149, %s151
    %p155 = scmp.eq.s32.totalorder %s12, 0
    %p156 = por %p154, %p155
    %p157 = scmp.ne.s32.totalorder %s149, %s151
    %p158 = scmp.eq.s32.totalorder %s17, 3
    %p159 = por %p157, %p158
    %p160 = scmp.ne.s32.totalorder %s151, %s152
    %p161 = scmp.eq.s32.totalorder %s17, 0
    %p162 = por %p160, %p161
    %p163 = scmp.ne.s32.totalorder %s151, %s152
    %p164 = scmp.eq.s32.totalorder %s18, 3
    %p165 = por %p163, %p164
    %p167 = scmp.ne.s32.totalorder %s152, %s166
    %p168 = scmp.eq.s32.totalorder %s18, 0
    %p169 = por %p167, %p168
    %s170 = ssub.s32 %s19, %s31
    %s171 = ssub.s32 %s20, %s27
    %s172 = sor.u32 %s170, %s171
    %p173 = scmp.eq.s32.totalorder %s172, 0
    %s175 = sadd.s32 %s174, 1
    %s176 = scalar_select %p173, %s174, %s175
    %p179 = pneg %p173
    %p180 = scmp.eq.s32.totalorder %s12, 3
    %p181 = por %p179, %p180
    %p182 = scmp.ne.s32.totalorder %s174, %s177
    %p183 = scmp.eq.s32.totalorder %s12, 0
    %p184 = por %p182, %p183
    %p185 = scmp.ne.s32.totalorder %s174, %s177
    %p186 = scmp.eq.s32.totalorder %s17, 3
    %p187 = por %p185, %p186
    %p188 = scmp.ne.s32.totalorder %s177, %s178
    %p189 = scmp.eq.s32.totalorder %s17, 0
    %p190 = por %p188, %p189
    %p191 = scmp.ne.s32.totalorder %s177, %s178
    %p192 = scmp.eq.s32.totalorder %s18, 3
    %p193 = por %p191, %p192
    %p195 = scmp.ne.s32.totalorder %s178, %s194
    %p196 = scmp.eq.s32.totalorder %s18, 0
    %p197 = por %p195, %p196
    %p198 = scmp.le.s32.totalorder 1, %s12
    %p199 = scmp.lt.s32.totalorder %s12, 5
    %p200 = pnand %p198, %p199
    %p201 = pneg %p200
    // Predicated region
    $region9: #{_lambda_.3} parent=5 // pred_check
      _
    $region10: #{_lambda_.3} parent=5 // pred_check_branch
      %203 = sbr.rel (%p200) target = $region12
    $region11: #{_lambda_.3} parent=5 // pred_region
      %s204 = ssub.s32 %s12, 1
      // Predicated region
      $region13: #{_lambda_.3} parent=11 // pred_check
        %p205 = pneg %p99
      $region14: #{_lambda_.3} parent=11 // pred_check_branch
        %207 = sbr.rel (%p205) target = $region16
      $region15: #{_lambda_.3} parent=11 // pred_region
        _
      $region16: #{_lambda_.3} parent=11 // pred_fallthru
        _
      // Predicated region
      $region17: #{_lambda_.3} parent=11 // pred_check
        %p208 = pneg %p120
      $region18: #{_lambda_.3} parent=11 // pred_check_branch
        %210 = sbr.rel (%p208) target = $region20
      $region19: #{_lambda_.3} parent=11 // pred_region
        _
      $region20: #{_lambda_.3} parent=11 // pred_fallthru
        _
      // Predicated region
      $region21: #{_lambda_.3} parent=11 // pred_check
        %p211 = pneg %p141
      $region22: #{_lambda_.3} parent=11 // pred_check_branch
        %213 = sbr.rel (%p211) target = $region24
      $region23: #{_lambda_.3} parent=11 // pred_region
        _
      $region24: #{_lambda_.3} parent=11 // pred_fallthru
        _
      // Predicated region
      $region25: #{_lambda_.3} parent=11 // pred_check
        %p214 = pneg %p162
      $region26: #{_lambda_.3} parent=11 // pred_check_branch
        %216 = sbr.rel (%p214) target = $region28
      $region27: #{_lambda_.3} parent=11 // pred_region
        _
      $region28: #{_lambda_.3} parent=11 // pred_fallthru
        _
    $region12: #{_lambda_.3} parent=5 // pred_fallthru
      _
    %p217 = scmp.lt.s32.totalorder %s12, 4
    // Predicated region
    $region29: #{_lambda_.3} parent=5 // pred_check
      %p218 = pneg %p217
    $region30: #{_lambda_.3} parent=5 // pred_check_branch
      %220 = sbr.rel (%p218) target = $region32
    $region31: #{_lambda_.3} parent=5 // pred_region
      // Predicated region
      $region33: #{_lambda_.3} parent=31 // pred_check
        %p221 = pneg %p46
      $region34: #{_lambda_.3} parent=31 // pred_check_branch
        %223 = sbr.rel (%p221) target = $region36
      $region35: #{_lambda_.3} parent=31 // pred_region
        %s224 = smul.u32 4, %s20
        %p225 = scmp.lt.s32.totalorder %s19, 1
        %s226 = scalar_select %p225, %s19, 1
        %p227 = scmp.lt.s32.totalorder %s224, 7
        %s228 = scalar_select %p227, %s224, 7
        %s229 = smul.addr %s226, 8
        %s230 = sadd.s32 %s228, %s229
        %s231 = smul.addr %s230, 8
        %s232 = scalar_lea.vmem %s0, %s231
        %s233 = smul.u32 4, %s20
      $region36: #{_lambda_.3} parent=31 // pred_fallthru
        _
      // Predicated region
      $region37: #{_lambda_.3} parent=31 // pred_check
        %p234 = pneg %p72
      $region38: #{_lambda_.3} parent=31 // pred_check_branch
        %236 = sbr.rel (%p234) target = $region40
      $region39: #{_lambda_.3} parent=31 // pred_region
        %p237 = scmp.lt.s32.totalorder %s19, 1
        %s238 = scalar_select %p237, %s19, 1
        %s239 = scalar_lea.vmem %s1, %s238
      $region40: #{_lambda_.3} parent=31 // pred_fallthru
        _
    $region32: #{_lambda_.3} parent=5 // pred_fallthru
      _
    %p240 = scmp.le.s32.totalorder 1, %s12
    %p241 = scmp.lt.s32.totalorder %s12, 5
    %p242 = pnand %p240, %p241
    %p243 = pneg %p242
    // Predicated region
    $region41: #{_lambda_.3} parent=5 // pred_check
      _
    $region42: #{_lambda_.3} parent=5 // pred_check_branch
      %245 = sbr.rel (%p242) target = $region44
    $region43: #{_lambda_.3} parent=5 // pred_region
      %s246 = ssub.s32 %s12, 1
      %s247 = smul.u32 4, %s22
      %p248 = scmp.lt.s32.totalorder %s21, 1
      %s249 = scalar_select %p248, %s21, 1
      %p250 = scmp.lt.s32.totalorder %s247, 7
      %s251 = scalar_select %p250, %s247, 7
      %s252 = smul.addr %s249, 8
      %s253 = sadd.s32 %s251, %s252
      %s254 = smul.addr %s253, 8
      %s255 = scalar_lea.vmem %s0, %s254
      %p256 = pneg %p52
      %p257 = pneg %p49
      %p258 = scmp.lt.s32.totalorder %s21, 1
      %s259 = scalar_select %p258, %s21, 1
      %s260 = scalar_lea.vmem %s1, %s259
      %p261 = pneg %p78
      %p262 = pneg %p75
      %p263 = pneg %p99
      %p264 = pneg %p96
      %p265 = pneg %p120
      %p266 = pneg %p117
      %p267 = pneg %p141
      %p268 = pneg %p138
      %p269 = pneg %p162
      %p270 = pneg %p159
      %p271 = pneg %p190
      %p272 = pneg %p187
      %s273 = smul.u32 4, %s22
      %p274 = scmp.lt.s32.totalorder %s21, 1
      %s275 = scalar_select %p274, %s21, 1
      %p276 = scmp.lt.s32.totalorder %s273, 7
      %s277 = scalar_select %p276, %s273, 7
      %s278 = smul.addr %s275, 8
      %s279 = sadd.s32 %s277, %s278
      %s280 = smul.addr %s279, 8
      %s281 = scalar_lea.vmem %s6, %s280
      %s282 = smul.u32 4, %s22
      %p283 = scmp.lt.s32.totalorder %s21, 1
      %s284 = scalar_select %p283, %s21, 1
      %p285 = scmp.lt.s32.totalorder %s282, 7
      %s286 = scalar_select %p285, %s282, 7
      %s287 = smul.addr %s284, 8
      %s288 = sadd.s32 %s286, %s287
      %s289 = smul.addr %s288, 8
      %s290 = scalar_lea.vmem %s0, %s289
      %s291 = smul.u32 4, %s22
      %p292 = scmp.lt.s32.totalorder %s21, 1
      %s293 = scalar_select %p292, %s21, 1
      %s294 = scalar_lea.vmem %s1, %s293
      %s295 = smul.u32 4, %s22
      %p296 = scmp.lt.s32.totalorder %s21, 1
      %s297 = scalar_select %p296, %s21, 1
      %p298 = scmp.lt.s32.totalorder %s295, 7
      %s299 = scalar_select %p298, %s295, 7
      %s300 = smul.addr %s297, 8
      %s301 = sadd.s32 %s299, %s300
      %s302 = smul.addr %s301, 8
      %s303 = scalar_lea.vmem %s6, %s302
      %s304 = smul.u32 4, %s22
      %v305 = vld [vmem:[%s294] sm:$0x1]
      %v306 = vmul.f32 %v305, 0.015625
      %v307 = vld [vmem:[%s2] sm:$0xff]
      %v308 = vld [vmem:[%s2 + $0x8] sm:$0xff]
      %v309 = vld [vmem:[%s2 + $0x10] sm:$0xff]
      %v310 = vld [vmem:[%s2 + $0x18] sm:$0xff]
      %v311 = vld [vmem:[%s2 + $0x20] sm:$0xff]
      %v312 = vld [vmem:[%s2 + $0x28] sm:$0xff]
      %v313 = vld [vmem:[%s2 + $0x30] sm:$0xff]
      %v314 = vld [vmem:[%s2 + $0x38] sm:$0xff]
      %v315 = vld [vmem:[%s2 + $0x40] sm:$0xff]
      %v316 = vld [vmem:[%s2 + $0x48] sm:$0xff]
      %v317 = vld [vmem:[%s2 + $0x50] sm:$0xff]
      %v318 = vld [vmem:[%s2 + $0x58] sm:$0xff]
      %v319 = vld [vmem:[%s2 + $0x60] sm:$0xff]
      %v320 = vld [vmem:[%s2 + $0x68] sm:$0xff]
      %v321 = vld [vmem:[%s2 + $0x70] sm:$0xff]
      %v322 = vld [vmem:[%s2 + $0x78] sm:$0xff]
      %v323 = vld [vmem:[%s3] sm:$0x1]
      %324 = vmatpush.msra.mxu0 %v322
      %325 = vmatpush.msra.mxu0 %v321
      %326 = vmatpush.msra.mxu0 %v320
      %327 = vmatpush.msra.mxu0 %v319
      %328 = vmatpush.msra.mxu0 %v318
      %329 = vmatpush.msra.mxu0 %v317
      %330 = vmatpush.msra.mxu0 %v316
      %331 = vmatpush.msra.mxu0 %v315
      %332 = vmatpush.msra.mxu0 %v314
      %333 = vmatpush.msra.mxu0 %v313
      %334 = vmatpush.msra.mxu0 %v312
      %335 = vmatpush.msra.mxu0 %v311
      %336 = vmatpush.msra.mxu0 %v310
      %337 = vmatpush.msra.mxu0 %v309
      %338 = vmatpush.msra.mxu0 %v308
      %339 = vmatpush.msra.mxu0 %v307
      %340 = vmatmul.f32.gmra.mxu0 %v306
      %v341 = vpop.f32.mrf.mxu0
      %v342 = vadd.f32 %v323, %v341
      %343 = vdwg.mxu0
      %v344 = vmax.f32 %v342, 0.0
      %v345 = vld [vmem:[%s4] sm:$0xff]
      %v346 = vld [vmem:[%s4 + $0x8] sm:$0xff]
      %v347 = vld [vmem:[%s4 + $0x10] sm:$0xff]
      %v348 = vld [vmem:[%s4 + $0x18] sm:$0xff]
      %v349 = vld [vmem:[%s4 + $0x20] sm:$0xff]
      %v350 = vld [vmem:[%s4 + $0x28] sm:$0xff]
      %v351 = vld [vmem:[%s4 + $0x30] sm:$0xff]
      %v352 = vld [vmem:[%s4 + $0x38] sm:$0xff]
      %v353 = vld [vmem:[%s4 + $0x40] sm:$0xff]
      %v354 = vld [vmem:[%s4 + $0x48] sm:$0xff]
      %v355 = vld [vmem:[%s4 + $0x50] sm:$0xff]
      %v356 = vld [vmem:[%s4 + $0x58] sm:$0xff]
      %v357 = vld [vmem:[%s4 + $0x60] sm:$0xff]
      %v358 = vld [vmem:[%s4 + $0x68] sm:$0xff]
      %v359 = vld [vmem:[%s4 + $0x70] sm:$0xff]
      %v360 = vld [vmem:[%s4 + $0x78] sm:$0xff]
      %v361 = vld [vmem:[%s5] sm:$0x1]
      %362 = vmatpush.msra.mxu0 %v360
      %363 = vmatpush.msra.mxu0 %v359
      %364 = vmatpush.msra.mxu0 %v358
      %365 = vmatpush.msra.mxu0 %v357
      %366 = vmatpush.msra.mxu0 %v356
      %367 = vmatpush.msra.mxu0 %v355
      %368 = vmatpush.msra.mxu0 %v354
      %369 = vmatpush.msra.mxu0 %v353
      %370 = vmatpush.msra.mxu0 %v352
      %371 = vmatpush.msra.mxu0 %v351
      %372 = vmatpush.msra.mxu0 %v350
      %373 = vmatpush.msra.mxu0 %v349
      %374 = vmatpush.msra.mxu0 %v348
      %375 = vmatpush.msra.mxu0 %v347
      %376 = vmatpush.msra.mxu0 %v346
      %377 = vmatpush.msra.mxu0 %v345
      %378 = vmatmul.f32.gmra.mxu0 %v344
      %v379 = vpop.f32.mrf.mxu0
      %v380 = vadd.f32 %v361, %v379
      %381 = vdwg.mxu0
      %v382 = vxor.u32 %v380, 2147483648
      %v383 = vmul.f32 %v382, 1.442695
      %v384 = vpow.pop %v383
      %v385 = vadd.f32 %v384, 1.0
      %v386 = vrcp.pop %v385
      %v387 = vmul.f32 %v385, %v386
      %v388 = vsub.f32 1.0, %v387
      %v389 = vmul.f32 %v386, %v388
      %v390 = vadd.f32 %v386, %v389
      %vm391 = vweird.f32 %v385
      %vm392 = vweird.f32 %v386
      %vm393 = vmor %vm391, %vm392
      %v394 = vsel %vm393, %v386, %v390
      %v395 = vand.u32 2147483647, %v385
      %vm396 = vcmp.eq.f32.partialorder %v395, 8.507059e+37
      %v397 = vand.u32 %v385, 2147483648
      %v398 = vor.u32 1.1754944e-38, %v397
      %v399 = vsel %vm396, %v398, %v394
      %v400 = vmul.f32 1.0, %v399
      %v401 = vld [vmem:[%s290] sm:$0xff]
      %v402 = vld [vmem:[%s290 + $0x8] sm:$0xff]
      %v403 = vld [vmem:[%s290 + $0x10] sm:$0xff]
      %v404 = vld [vmem:[%s290 + $0x18] sm:$0xff]
      %v405 = vperm.slane %v400, 0
      %v406 = vmul.f32 %v401, %v405
      %v407 = vmul.f32 %v402, %v405
      %v408 = vmul.f32 %v403, %v405
      %v409 = vmul.f32 %v404, %v405
      %410 = vst [vmem:[%s303] sm:$0xff] %v406
      %411 = vst [vmem:[%s303 + $0x8] sm:$0xff] %v407
      %412 = vst [vmem:[%s303 + $0x10] sm:$0xff] %v408
      %413 = vst [vmem:[%s303 + $0x18] sm:$0xff] %v409
      %s414 = smul.u32 4, %s22
      %p415 = scmp.lt.s32.totalorder %s21, 1
      %s416 = scalar_select %p415, %s21, 1
      %p417 = scmp.lt.s32.totalorder %s414, 7
      %s418 = scalar_select %p417, %s414, 7
      %s419 = smul.addr %s416, 8
      %s420 = sadd.s32 %s418, %s419
      %s421 = smul.addr %s420, 8
      %s422 = scalar_lea.vmem %s6, %s421
      // Predicated region
      $region45: #{_lambda_.3} parent=43 // pred_check
        %p423 = pneg %p187
      $region46: #{_lambda_.3} parent=43 // pred_check_branch
        %425 = sbr.rel (%p423) target = $region48
      $region47: #{_lambda_.3} parent=43 // pred_region
        %s426 = smul.u32 4, %s22
      $region48: #{_lambda_.3} parent=43 // pred_fallthru
        _
    $region44: #{_lambda_.3} parent=5 // pred_fallthru
      _
    %p427 = scmp.le.s32.totalorder 2, %s12
    // Predicated region
    $region49: #{_lambda_.3} parent=5 // pred_check
      %p428 = pneg %p427
    $region50: #{_lambda_.3} parent=5 // pred_check_branch
      %430 = sbr.rel (%p428) target = $region52
    $region51: #{_lambda_.3} parent=5 // pred_region
      %s431 = ssub.s32 %s12, 2
      // Predicated region
      $region53: #{_lambda_.3} parent=51 // pred_check
        %p432 = pneg %p193
      $region54: #{_lambda_.3} parent=51 // pred_check_branch
        %434 = sbr.rel (%p432) target = $region56
      $region55: #{_lambda_.3} parent=51 // pred_region
        %s435 = smul.u32 4, %s24
        %p436 = scmp.lt.s32.totalorder %s23, 1
        %s437 = scalar_select %p436, %s23, 1
        %p438 = scmp.lt.s32.totalorder %s435, 7
        %s439 = scalar_select %p438, %s435, 7
        %s440 = smul.addr %s437, 8
        %s441 = sadd.s32 %s439, %s440
        %s442 = smul.addr %s441, 8
        %s443 = scalar_lea.vmem %s6, %s442
      $region56: #{_lambda_.3} parent=51 // pred_fallthru
        _
    $region52: #{_lambda_.3} parent=5 // pred_fallthru
      _
  $region6: #{_lambda_.3} parent=0 // loop_footer
    %s16 = sadd.s32 1, %s12
  $region7: #{_lambda_.3} parent=0 // loop_footer_branch
    %11 = sbr.rel target = $region3
  $region8: #{_lambda_.3} parent=0 // loop_exit
    _

// kernel: _lambda_.2
$region0: #{_lambda_.2}
  #allocation0 [shape = 'u32[]', space=smem, size = 0x4, offset = 0x4, fixed_abs, tag = 'smem constant byte address 0x4 - core index']
  #allocation1 [shape = 'u32[72,128]{1,0:T(1,128)}', space=vmem, size = 0x9000, scoped, tag = 'internal scratch']
  #allocation2 [shape = 'bf16[2,48,128]{2,1,0:T(8,128)(2,1)}', space=vmem, size = 0x6000, scoped, tag = 'scratch operand']
  #allocation3 [shape = 's32[2]{0}', space=sflag, size = 0x8, scoped, tag = 'scratch operand']
  #allocation4 [shape = 's32[]', space=sflag, size = 0x4, offset = 0, fixed_abs, tag = 'sflag constant byte address 0x0 - dummy sync flag']
  #allocation5 [shape = 's32[]', space=sflag, size = 0x4, offset = 0, fixed_abs, tag = 'sflag constant byte address 0x0 - dummy sync flag']
  %s0 = inlined_call_operand.vmem [shape: bf16[2,80,128], index: 0, kind: input, shape index: {}]
  %s1 = inlined_call_operand.vmem [shape: bf16[128,128], index: 1, kind: input, shape index: {}]
  %s2 = inlined_call_operand.vmem [shape: f32[1,128], index: 2, kind: input, shape index: {}]
  %s3 = inlined_call_operand.vmem [shape: f32[3,3,128], index: 3, kind: input, shape index: {}]
  %s4 = inlined_call_operand.vmem [shape: f32[1,128], index: 4, kind: input, shape index: {}]
  %s5 = inlined_call_operand.vmem [shape: f32[1,128], index: 5, kind: input, shape index: {}]
  %s6 = inlined_call_operand.vmem [shape: bf16[128,128], index: 6, kind: input, shape index: {}]
  %s7 = inlined_call_operand.vmem [shape: f32[1,128], index: 7, kind: input, shape index: {}]
  %s8 = inlined_call_operand.vmem [shape: f32[2,48,1], index: 8, kind: input, shape index: {}]
  %s9 = inlined_call_operand.vmem [shape: f32[2,48,1], index: 9, kind: input, shape index: {}]
  %s10 = inlined_call_operand.vmem [shape: f32[2,64,128], index: 10, kind: output, shape index: {0}]
  %s11 = inlined_call_operand.vmem [shape: f32[2,1,128], index: 11, kind: output, shape index: {1}]
  %12 = xla_tuple %s10, %s11
  %s13 = sld [smem:[#allocation0]]
  $region127: #{_lambda_.2} parent=0
    _
  %s15 = ssub.s32 1, %s13
  %s16 = scalar_select 0, %s15, %s13
  loop: start=0, step=1, limit=6
  $region2: #{_lambda_.2} parent=0 // loop_pre_header
    _
  $region3: #{_lambda_.2} parent=0 // loop_header
    %s18 = sphi 0, %s22
    %p19 = scmp.ge.s32.totalorder %s18, 6
    %s25 = sphi 0, %s37
    %s26 = sphi 0, %s33
    %s27 = sphi 0, %s25
    %s28 = sphi 0, %s26
    %s29 = sphi 0, %s27
    %s30 = sphi 0, %s28
    %s38 = sphi 0, %s38
    %s40 = sphi 0, %s38
    %s41 = sphi 0, %s40
    %s55 = sphi 0, %s41
    %s59 = sphi 0, %s59
    %s61 = sphi 0, %s59
    %s62 = sphi 0, %s61
    %s76 = sphi 0, %s62
    %s80 = sphi 0, %s80
    %s82 = sphi 0, %s80
    %s83 = sphi 0, %s82
    %s97 = sphi 0, %s83
    %s101 = sphi 0, %s101
    %s103 = sphi 0, %s101
    %s104 = sphi 0, %s103
    %s118 = sphi 0, %s104
    %s122 = sphi 0, %s122
    %s124 = sphi 0, %s122
    %s125 = sphi 0, %s124
    %s139 = sphi 0, %s125
    %s143 = sphi 0, %s143
    %s145 = sphi 0, %s143
    %s146 = sphi 0, %s145
    %s160 = sphi 0, %s146
    %s164 = sphi 0, %s164
    %s166 = sphi 0, %s164
    %s167 = sphi 0, %s166
    %s181 = sphi 0, %s167
    %s187 = sphi 0, %s189
    %s190 = sphi 0, %s187
    %s191 = sphi 0, %s190
    %s207 = sphi 0, %s191
    %s211 = sphi 0, %s211
    %s213 = sphi 0, %s211
    %s214 = sphi 0, %s213
    %s228 = sphi 0, %s214
    %s236 = sphi 0, %s238
    %s239 = sphi 0, %s236
    %s240 = sphi 0, %s239
    %s256 = sphi 0, %s240
    %s262 = sphi 0, %s264
    %s265 = sphi 0, %s262
    %s266 = sphi 0, %s265
    %s282 = sphi 0, %s266
  $region4: #{_lambda_.2} parent=0 // loop_header_branch
    %21 = sbr.rel (%p19) target = $region8
  $region5: #{_lambda_.2} parent=0 // loop_body
    %s23 = ssub.s32 %s18, 1
    %s24 = ssub.s32 %s18, 2
    %s31 = sadd.s32 1, %s26
    %p32 = scmp.ge.s32.totalorder %s31, 2
    %s33 = scalar_select %p32, 0, %s31
    %s34 = sadd.s32 1, %s25
    %s35 = scalar_select %p32, %s34, %s25
    %p36 = scmp.ge.s32.totalorder %s35, 2
    %s37 = scalar_select %p36, 0, %s35
    %s39 = sadd.s32 %s38, 1
    %p42 = scmp.eq.s32.totalorder %s18, 3
    %p43 = scmp.ne.s32.totalorder %s38, %s40
    %p44 = scmp.eq.s32.totalorder %s18, 0
    %p45 = por %p43, %p44
    %p46 = scmp.ne.s32.totalorder %s38, %s40
    %p47 = scmp.eq.s32.totalorder %s23, 3
    %p48 = por %p46, %p47
    %p49 = scmp.ne.s32.totalorder %s40, %s41
    %p50 = scmp.eq.s32.totalorder %s23, 0
    %p51 = por %p49, %p50
    %p52 = scmp.ne.s32.totalorder %s40, %s41
    %p53 = scmp.eq.s32.totalorder %s24, 3
    %p54 = por %p52, %p53
    %p56 = scmp.ne.s32.totalorder %s41, %s55
    %p57 = scmp.eq.s32.totalorder %s24, 0
    %p58 = por %p56, %p57
    %s60 = sadd.s32 %s59, 1
    %p63 = scmp.eq.s32.totalorder %s18, 3
    %p64 = scmp.ne.s32.totalorder %s59, %s61
    %p65 = scmp.eq.s32.totalorder %s18, 0
    %p66 = por %p64, %p65
    %p67 = scmp.ne.s32.totalorder %s59, %s61
    %p68 = scmp.eq.s32.totalorder %s23, 3
    %p69 = por %p67, %p68
    %p70 = scmp.ne.s32.totalorder %s61, %s62
    %p71 = scmp.eq.s32.totalorder %s23, 0
    %p72 = por %p70, %p71
    %p73 = scmp.ne.s32.totalorder %s61, %s62
    %p74 = scmp.eq.s32.totalorder %s24, 3
    %p75 = por %p73, %p74
    %p77 = scmp.ne.s32.totalorder %s62, %s76
    %p78 = scmp.eq.s32.totalorder %s24, 0
    %p79 = por %p77, %p78
    %s81 = sadd.s32 %s80, 1
    %p84 = scmp.eq.s32.totalorder %s18, 3
    %p85 = scmp.ne.s32.totalorder %s80, %s82
    %p86 = scmp.eq.s32.totalorder %s18, 0
    %p87 = por %p85, %p86
    %p88 = scmp.ne.s32.totalorder %s80, %s82
    %p89 = scmp.eq.s32.totalorder %s23, 3
    %p90 = por %p88, %p89
    %p91 = scmp.ne.s32.totalorder %s82, %s83
    %p92 = scmp.eq.s32.totalorder %s23, 0
    %p93 = por %p91, %p92
    %p94 = scmp.ne.s32.totalorder %s82, %s83
    %p95 = scmp.eq.s32.totalorder %s24, 3
    %p96 = por %p94, %p95
    %p98 = scmp.ne.s32.totalorder %s83, %s97
    %p99 = scmp.eq.s32.totalorder %s24, 0
    %p100 = por %p98, %p99
    %s102 = sadd.s32 %s101, 1
    %p105 = scmp.eq.s32.totalorder %s18, 3
    %p106 = scmp.ne.s32.totalorder %s101, %s103
    %p107 = scmp.eq.s32.totalorder %s18, 0
    %p108 = por %p106, %p107
    %p109 = scmp.ne.s32.totalorder %s101, %s103
    %p110 = scmp.eq.s32.totalorder %s23, 3
    %p111 = por %p109, %p110
    %p112 = scmp.ne.s32.totalorder %s103, %s104
    %p113 = scmp.eq.s32.totalorder %s23, 0
    %p114 = por %p112, %p113
    %p115 = scmp.ne.s32.totalorder %s103, %s104
    %p116 = scmp.eq.s32.totalorder %s24, 3
    %p117 = por %p115, %p116
    %p119 = scmp.ne.s32.totalorder %s104, %s118
    %p120 = scmp.eq.s32.totalorder %s24, 0
    %p121 = por %p119, %p120
    %s123 = sadd.s32 %s122, 1
    %p126 = scmp.eq.s32.totalorder %s18, 3
    %p127 = scmp.ne.s32.totalorder %s122, %s124
    %p128 = scmp.eq.s32.totalorder %s18, 0
    %p129 = por %p127, %p128
    %p130 = scmp.ne.s32.totalorder %s122, %s124
    %p131 = scmp.eq.s32.totalorder %s23, 3
    %p132 = por %p130, %p131
    %p133 = scmp.ne.s32.totalorder %s124, %s125
    %p134 = scmp.eq.s32.totalorder %s23, 0
    %p135 = por %p133, %p134
    %p136 = scmp.ne.s32.totalorder %s124, %s125
    %p137 = scmp.eq.s32.totalorder %s24, 3
    %p138 = por %p136, %p137
    %p140 = scmp.ne.s32.totalorder %s125, %s139
    %p141 = scmp.eq.s32.totalorder %s24, 0
    %p142 = por %p140, %p141
    %s144 = sadd.s32 %s143, 1
    %p147 = scmp.eq.s32.totalorder %s18, 3
    %p148 = scmp.ne.s32.totalorder %s143, %s145
    %p149 = scmp.eq.s32.totalorder %s18, 0
    %p150 = por %p148, %p149
    %p151 = scmp.ne.s32.totalorder %s143, %s145
    %p152 = scmp.eq.s32.totalorder %s23, 3
    %p153 = por %p151, %p152
    %p154 = scmp.ne.s32.totalorder %s145, %s146
    %p155 = scmp.eq.s32.totalorder %s23, 0
    %p156 = por %p154, %p155
    %p157 = scmp.ne.s32.totalorder %s145, %s146
    %p158 = scmp.eq.s32.totalorder %s24, 3
    %p159 = por %p157, %p158
    %p161 = scmp.ne.s32.totalorder %s146, %s160
    %p162 = scmp.eq.s32.totalorder %s24, 0
    %p163 = por %p161, %p162
    %s165 = sadd.s32 %s164, 1
    %p168 = scmp.eq.s32.totalorder %s18, 3
    %p169 = scmp.ne.s32.totalorder %s164, %s166
    %p170 = scmp.eq.s32.totalorder %s18, 0
    %p171 = por %p169, %p170
    %p172 = scmp.ne.s32.totalorder %s164, %s166
    %p173 = scmp.eq.s32.totalorder %s23, 3
    %p174 = por %p172, %p173
    %p175 = scmp.ne.s32.totalorder %s166, %s167
    %p176 = scmp.eq.s32.totalorder %s23, 0
    %p177 = por %p175, %p176
    %p178 = scmp.ne.s32.totalorder %s166, %s167
    %p179 = scmp.eq.s32.totalorder %s24, 3
    %p180 = por %p178, %p179
    %p182 = scmp.ne.s32.totalorder %s167, %s181
    %p183 = scmp.eq.s32.totalorder %s24, 0
    %p184 = por %p182, %p183
    %s185 = ssub.s32 %s26, %s33
    %p186 = scmp.eq.s32.totalorder %s185, 0
    %s188 = sadd.s32 %s187, 1
    %s189 = scalar_select %p186, %s187, %s188
    %p192 = pneg %p186
    %p193 = scmp.eq.s32.totalorder %s18, 3
    %p194 = por %p192, %p193
    %p195 = scmp.ne.s32.totalorder %s187, %s190
    %p196 = scmp.eq.s32.totalorder %s18, 0
    %p197 = por %p195, %p196
    %p198 = scmp.ne.s32.totalorder %s187, %s190
    %p199 = scmp.eq.s32.totalorder %s23, 3
    %p200 = por %p198, %p199
    %p201 = scmp.ne.s32.totalorder %s190, %s191
    %p202 = scmp.eq.s32.totalorder %s23, 0
    %p203 = por %p201, %p202
    %p204 = scmp.ne.s32.totalorder %s190, %s191
    %p205 = scmp.eq.s32.totalorder %s24, 3
    %p206 = por %p204, %p205
    %p208 = scmp.ne.s32.totalorder %s191, %s207
    %p209 = scmp.eq.s32.totalorder %s24, 0
    %p210 = por %p208, %p209
    %s212 = sadd.s32 %s211, 1
    %p215 = scmp.eq.s32.totalorder %s18, 3
    %p216 = scmp.ne.s32.totalorder %s211, %s213
    %p217 = scmp.eq.s32.totalorder %s18, 0
    %p218 = por %p216, %p217
    %p219 = scmp.ne.s32.totalorder %s211, %s213
    %p220 = scmp.eq.s32.totalorder %s23, 3
    %p221 = por %p219, %p220
    %p222 = scmp.ne.s32.totalorder %s213, %s214
    %p223 = scmp.eq.s32.totalorder %s23, 0
    %p224 = por %p222, %p223
    %p225 = scmp.ne.s32.totalorder %s213, %s214
    %p226 = scmp.eq.s32.totalorder %s24, 3
    %p227 = por %p225, %p226
    %p229 = scmp.ne.s32.totalorder %s214, %s228
    %p230 = scmp.eq.s32.totalorder %s24, 0
    %p231 = por %p229, %p230
    %s232 = ssub.s32 %s25, %s37
    %s233 = ssub.s32 %s26, %s33
    %s234 = sor.u32 %s232, %s233
    %p235 = scmp.eq.s32.totalorder %s234, 0
    %s237 = sadd.s32 %s236, 1
    %s238 = scalar_select %p235, %s236, %s237
    %p241 = pneg %p235
    %p242 = scmp.eq.s32.totalorder %s18, 3
    %p243 = por %p241, %p242
    %p244 = scmp.ne.s32.totalorder %s236, %s239
    %p245 = scmp.eq.s32.totalorder %s18, 0
    %p246 = por %p244, %p245
    %p247 = scmp.ne.s32.totalorder %s236, %s239
    %p248 = scmp.eq.s32.totalorder %s23, 3
    %p249 = por %p247, %p248
    %p250 = scmp.ne.s32.totalorder %s239, %s240
    %p251 = scmp.eq.s32.totalorder %s23, 0
    %p252 = por %p250, %p251
    %p253 = scmp.ne.s32.totalorder %s239, %s240
    %p254 = scmp.eq.s32.totalorder %s24, 3
    %p255 = por %p253, %p254
    %p257 = scmp.ne.s32.totalorder %s240, %s256
    %p258 = scmp.eq.s32.totalorder %s24, 0
    %p259 = por %p257, %p258
    %s260 = ssub.s32 %s25, %s37
    %p261 = scmp.eq.s32.totalorder %s260, 0
    %s263 = sadd.s32 %s262, 1
    %s264 = scalar_select %p261, %s262, %s263
    %p267 = pneg %p261
    %p268 = scmp.eq.s32.totalorder %s18, 3
    %p269 = por %p267, %p268
    %p270 = scmp.ne.s32.totalorder %s262, %s265
    %p271 = scmp.eq.s32.totalorder %s18, 0
    %p272 = por %p270, %p271
    %p273 = scmp.ne.s32.totalorder %s262, %s265
    %p274 = scmp.eq.s32.totalorder %s23, 3
    %p275 = por %p273, %p274
    %p276 = scmp.ne.s32.totalorder %s265, %s266
    %p277 = scmp.eq.s32.totalorder %s23, 0
    %p278 = por %p276, %p277
    %p279 = scmp.ne.s32.totalorder %s265, %s266
    %p280 = scmp.eq.s32.totalorder %s24, 3
    %p281 = por %p279, %p280
    %p283 = scmp.ne.s32.totalorder %s266, %s282
    %p284 = scmp.eq.s32.totalorder %s24, 0
    %p285 = por %p283, %p284
    %p286 = scmp.le.s32.totalorder 1, %s18
    %p287 = scmp.lt.s32.totalorder %s18, 5
    %p288 = pnand %p286, %p287
    %p289 = pneg %p288
    // Predicated region
    $region9: #{_lambda_.2} parent=5 // pred_check
      _
    $region10: #{_lambda_.2} parent=5 // pred_check_branch
      %291 = sbr.rel (%p288) target = $region12
    $region11: #{_lambda_.2} parent=5 // pred_region
      %s292 = ssub.s32 %s18, 1
      // Predicated region
      $region13: #{_lambda_.2} parent=11 // pred_check
        %p293 = pneg %p51
      $region14: #{_lambda_.2} parent=11 // pred_check_branch
        %295 = sbr.rel (%p293) target = $region16
      $region15: #{_lambda_.2} parent=11 // pred_region
        _
      $region16: #{_lambda_.2} parent=11 // pred_fallthru
        _
      // Predicated region
      $region17: #{_lambda_.2} parent=11 // pred_check
        %p296 = pneg %p72
      $region18: #{_lambda_.2} parent=11 // pred_check_branch
        %298 = sbr.rel (%p296) target = $region20
      $region19: #{_lambda_.2} parent=11 // pred_region
        _
      $region20: #{_lambda_.2} parent=11 // pred_fallthru
        _
      // Predicated region
      $region21: #{_lambda_.2} parent=11 // pred_check
        %p299 = pneg %p93
      $region22: #{_lambda_.2} parent=11 // pred_check_branch
        %301 = sbr.rel (%p299) target = $region24
      $region23: #{_lambda_.2} parent=11 // pred_region
        _
      $region24: #{_lambda_.2} parent=11 // pred_fallthru
        _
      // Predicated region
      $region25: #{_lambda_.2} parent=11 // pred_check
        %p302 = pneg %p114
      $region26: #{_lambda_.2} parent=11 // pred_check_branch
        %304 = sbr.rel (%p302) target = $region28
      $region27: #{_lambda_.2} parent=11 // pred_region
        _
      $region28: #{_lambda_.2} parent=11 // pred_fallthru
        _
      // Predicated region
      $region29: #{_lambda_.2} parent=11 // pred_check
        %p305 = pneg %p135
      $region30: #{_lambda_.2} parent=11 // pred_check_branch
        %307 = sbr.rel (%p305) target = $region32
      $region31: #{_lambda_.2} parent=11 // pred_region
        _
      $region32: #{_lambda_.2} parent=11 // pred_fallthru
        _
      // Predicated region
      $region33: #{_lambda_.2} parent=11 // pred_check
        %p308 = pneg %p156
      $region34: #{_lambda_.2} parent=11 // pred_check_branch
        %310 = sbr.rel (%p308) target = $region36
      $region35: #{_lambda_.2} parent=11 // pred_region
        _
      $region36: #{_lambda_.2} parent=11 // pred_fallthru
        _
      // Predicated region
      $region37: #{_lambda_.2} parent=11 // pred_check
        %p311 = pneg %p177
      $region38: #{_lambda_.2} parent=11 // pred_check_branch
        %313 = sbr.rel (%p311) target = $region40
      $region39: #{_lambda_.2} parent=11 // pred_region
        _
      $region40: #{_lambda_.2} parent=11 // pred_fallthru
        _
      // Predicated region
      $region41: #{_lambda_.2} parent=11 // pred_check
        %p314 = pneg %p224
      $region42: #{_lambda_.2} parent=11 // pred_check_branch
        %316 = sbr.rel (%p314) target = $region44
      $region43: #{_lambda_.2} parent=11 // pred_region
        _
      $region44: #{_lambda_.2} parent=11 // pred_fallthru
        _
    $region12: #{_lambda_.2} parent=5 // pred_fallthru
      _
    %p317 = scmp.lt.s32.totalorder %s18, 4
    // Predicated region
    $region45: #{_lambda_.2} parent=5 // pred_check
      %p318 = pneg %p317
    $region46: #{_lambda_.2} parent=5 // pred_check_branch
      %320 = sbr.rel (%p318) target = $region48
    $region47: #{_lambda_.2} parent=5 // pred_region
      // Predicated region
      $region49: #{_lambda_.2} parent=47 // pred_check
        %p321 = pneg %p197
      $region50: #{_lambda_.2} parent=47 // pred_check_branch
        %323 = sbr.rel (%p321) target = $region52
      $region51: #{_lambda_.2} parent=47 // pred_region
        %p324 = scmp.lt.s32.totalorder %s26, 1
        %s325 = scalar_select %p324, %s26, 1
        %s326 = smul.addr %s325, 6
        %s327 = smul.addr %s326, 8
        %s328 = scalar_lea.vmem %s8, %s327
      $region52: #{_lambda_.2} parent=47 // pred_fallthru
        _
    $region48: #{_lambda_.2} parent=5 // pred_fallthru
      _
    %p329 = scmp.le.s32.totalorder 1, %s18
    %p330 = scmp.lt.s32.totalorder %s18, 5
    %p331 = pnand %p329, %p330
    %p332 = pneg %p331
    // Predicated region
    $region53: #{_lambda_.2} parent=5 // pred_check
      _
    $region54: #{_lambda_.2} parent=5 // pred_check_branch
      %334 = sbr.rel (%p331) target = $region56
    $region55: #{_lambda_.2} parent=5 // pred_region
      %s335 = ssub.s32 %s18, 1
      %p336 = pneg %p51
      %p337 = pneg %p48
      %p338 = pneg %p72
      %p339 = pneg %p69
      %p340 = pneg %p93
      %p341 = pneg %p90
      %p342 = pneg %p114
      %p343 = pneg %p111
      %p344 = pneg %p135
      %p345 = pneg %p132
      %p346 = pneg %p156
      %p347 = pneg %p153
      %p348 = pneg %p177
      %p349 = pneg %p174
      %p350 = scmp.lt.s32.totalorder %s28, 1
      %s351 = scalar_select %p350, %s28, 1
      %s352 = smul.addr %s351, 6
      %s353 = smul.addr %s352, 8
      %s354 = scalar_lea.vmem %s8, %s353
      %p355 = pneg %p203
      %p356 = pneg %p200
      %p357 = pneg %p224
      %p358 = pneg %p221
      %p359 = pneg %p252
      %p360 = pneg %p249
      %s361 = smul.u32 4, %s28
      %p362 = scmp.lt.s32.totalorder %s27, 1
      %s363 = scalar_select %p362, %s27, 1
      %p364 = scmp.lt.s32.totalorder %s361, 7
      %s365 = scalar_select %p364, %s361, 7
      %s366 = smul.addr %s363, 8
      %s367 = sadd.s32 %s365, %s366
      %s368 = smul.addr %s367, 8
      %s369 = scalar_lea.vmem %s10, %s368
      %p370 = pneg %p278
      %p371 = pneg %p275
      %p372 = scmp.lt.s32.totalorder %s27, 1
      %s373 = scalar_select %p372, %s27, 1
      %s374 = scalar_lea.vmem %s11, %s373
      %p375 = scmp.lt.s32.totalorder %s28, 1
      %s376 = scalar_select %p375, %s28, 1
      %s377 = smul.addr %s376, 6
      %s378 = smul.addr %s377, 8
      %s379 = scalar_lea.vmem %s8, %s378
      %s380 = smul.u32 4, %s28
      %p381 = scmp.lt.s32.totalorder %s27, 1
      %s382 = scalar_select %p381, %s27, 1
      %p383 = scmp.lt.s32.totalorder %s380, 7
      %s384 = scalar_select %p383, %s380, 7
      %s385 = smul.addr %s382, 8
      %s386 = sadd.s32 %s384, %s385
      %s387 = smul.addr %s386, 8
      %s388 = scalar_lea.vmem %s10, %s387
      %s389 = smul.u32 4, %s28
      %p390 = scmp.lt.s32.totalorder %s27, 1
      %s391 = scalar_select %p390, %s27, 1
      %s392 = scalar_lea.vmem %s11, %s391
      %p393 = scmp.lt.s32.totalorder %s28, 0
      %s394 = ssub.s32 0, %s28
      %s395 = scalar_select %p393, %s394, %s28
      %s396 = sand.u32 %s395, 1
      %s397 = ssub.s32 0, %s396
      %s398 = scalar_select %p393, %s397, %s396
      %p399 = scmp.ne.s32.totalorder %s398, 0
      %p400 = scmp.lt.s32.totalorder %s398, 0
      %p401 = pnand %p400, %p399
      %p402 = pneg %p401
      %s403 = sadd.s32 %s398, 2
      %s404 = scalar_select %p402, %s403, %s398
      %p405 = scmp.eq.s32.totalorder %s28, 0
      // Predicated region
      $region57: #{_lambda_.2} parent=55 // pred_check
        %p406 = pneg %p405
      $region58: #{_lambda_.2} parent=55 // pred_check_branch
        %408 = sbr.rel (%p406) target = $region60
      $region59: #{_lambda_.2} parent=55 // pred_region
        %s409 = smul.u32 %s27, 10
        %s410 = smul.addr %s409, 4
        %s411 = scalar_lea.vmem %s0, %s410
        // Predicated region
        $region61: #{_lambda_.2} parent=59 // pred_check
          _
        $region62: #{_lambda_.2} parent=59 // pred_check_branch
          %413 = sbr.rel (0) target = $region64
        $region63: #{_lambda_.2} parent=59 // pred_region
          loop: start=0, step=1, limit=1
          $region65: #{_lambda_.2} parent=63 // loop_pre_header
            _
          $region66: #{_lambda_.2} parent=63 // loop_header
            %s415 = sphi 0, %s419
            %p416 = scmp.ge.s32.totalorder %s415, 1
            %s420 = sphi %s411, %s411
            %s421 = sphi [#allocation2], [#allocation2]
          $region67: #{_lambda_.2} parent=63 // loop_header_branch
            %418 = sbr.rel (%p416) target = $region71
          $region68: #{_lambda_.2} parent=63 // loop_body
            %v422 = vld [vmem:[%s420] sm:$0xff]
            %423 = vst [vmem:[%s421] sm:$0xff] %v422
            %v424 = vld [vmem:[%s420 + $0x8] sm:$0xff]
            %425 = vst [vmem:[%s421 + $0x8] sm:$0xff] %v424
            %v426 = vld [vmem:[%s420 + $0x10] sm:$0xff]
            %427 = vst [vmem:[%s421 + $0x10] sm:$0xff] %v426
          $region69: #{_lambda_.2} parent=63 // loop_footer
            %s419 = sadd.s32 1, %s415
          $region70: #{_lambda_.2} parent=63 // loop_footer_branch
            %414 = sbr.rel target = $region66
          $region71: #{_lambda_.2} parent=63 // loop_exit
            _
        $region64: #{_lambda_.2} parent=59 // pred_fallthru
          _
        // Predicated region
        $region72: #{_lambda_.2} parent=59 // pred_check
          _
        $region73: #{_lambda_.2} parent=59 // pred_check_branch
          %429 = sbr.rel target = $region75
        $region74: #{_lambda_.2} parent=59 // pred_region
          _
        $region75: #{_lambda_.2} parent=59 // pred_fallthru
          _
        // Predicated region
        $region76: #{_lambda_.2} parent=59 // pred_check
          _
        $region77: #{_lambda_.2} parent=59 // pred_check_branch
          %432 = sbr.rel (0) target = $region79
        $region78: #{_lambda_.2} parent=59 // pred_region
          %433 = vsyncadd [#allocation3], 384
        $region79: #{_lambda_.2} parent=59 // pred_fallthru
          _
      $region60: #{_lambda_.2} parent=55 // pred_fallthru
        _
      %s434 = smul.u32 %s404, 6
      %s435 = smul.addr %s434, 4
      %s436 = scalar_lea.vmem [#allocation2], %s435
      %s437 = scalar_lea.sflag [#allocation3], %s404
      %s438 = smul.u32 4, 6
      %s439 = smul.u32 %s438, 1
      %s440 = sshll.u32 %s439, 4
      %441 = dma.done %s437, %s440
      %s442 = sadd.s32 %s28, 1
      %p443 = scmp.lt.s32.totalorder %s442, 2
      // Predicated region
      $region80: #{_lambda_.2} parent=55 // pred_check
        %p444 = pneg %p443
      $region81: #{_lambda_.2} parent=55 // pred_check_branch
        %446 = sbr.rel (%p444) target = $region83
      $region82: #{_lambda_.2} parent=55 // pred_region
        %s447 = ssub.s32 1, %s404
        %s448 = smul.u32 %s442, 32
        %s449 = sshra.s32 %s448, 3
        %s450 = sand.u32 %s448, 7
        %s451 = smul.u32 %s27, 10
        %s452 = sadd.s32 %s449, %s451
        %s453 = smul.addr %s452, 4
        %s454 = scalar_lea.vmem %s0, %s453
        %s455 = smul.u32 %s447, 6
        %s456 = smul.addr %s455, 4
        %s457 = scalar_lea.vmem [#allocation2], %s456
        %s458 = scalar_lea.sflag [#allocation3], %s447
        // Predicated region
        $region84: #{_lambda_.2} parent=82 // pred_check
          _
        $region85: #{_lambda_.2} parent=82 // pred_check_branch
          %460 = sbr.rel (0) target = $region87
        $region86: #{_lambda_.2} parent=82 // pred_region
          loop: start=0, step=1, limit=1
          $region88: #{_lambda_.2} parent=86 // loop_pre_header
            _
          $region89: #{_lambda_.2} parent=86 // loop_header
            %s462 = sphi 0, %s466
            %p463 = scmp.ge.s32.totalorder %s462, 1
            %s467 = sphi %s454, %s454
            %s468 = sphi %s457, %s457
          $region90: #{_lambda_.2} parent=86 // loop_header_branch
            %465 = sbr.rel (%p463) target = $region94
          $region91: #{_lambda_.2} parent=86 // loop_body
            %v469 = vld [vmem:[%s467] sm:$0xff]
            %470 = vst [vmem:[%s468] sm:$0xff] %v469
            %v471 = vld [vmem:[%s467 + $0x8] sm:$0xff]
            %472 = vst [vmem:[%s468 + $0x8] sm:$0xff] %v471
            %v473 = vld [vmem:[%s467 + $0x10] sm:$0xff]
            %474 = vst [vmem:[%s468 + $0x10] sm:$0xff] %v473
          $region92: #{_lambda_.2} parent=86 // loop_footer
            %s466 = sadd.s32 1, %s462
          $region93: #{_lambda_.2} parent=86 // loop_footer_branch
            %461 = sbr.rel target = $region89
          $region94: #{_lambda_.2} parent=86 // loop_exit
            _
        $region87: #{_lambda_.2} parent=82 // pred_fallthru
          _
        // Predicated region
        $region95: #{_lambda_.2} parent=82 // pred_check
          _
        $region96: #{_lambda_.2} parent=82 // pred_check_branch
          %476 = sbr.rel target = $region98
        $region97: #{_lambda_.2} parent=82 // pred_region
          _
        $region98: #{_lambda_.2} parent=82 // pred_fallthru
          _
        // Predicated region
        $region99: #{_lambda_.2} parent=82 // pred_check
          _
        $region100: #{_lambda_.2} parent=82 // pred_check_branch
          %479 = sbr.rel (0) target = $region102
        $region101: #{_lambda_.2} parent=82 // pred_region
          %480 = vsyncadd %s458, 384
        $region102: #{_lambda_.2} parent=82 // pred_fallthru
          _
      $region83: #{_lambda_.2} parent=55 // pred_fallthru
        _
      %v481 = vld [vmem:[%s436] sm:$0xf]
      %v482 = vld [vmem:[%s436 + $0x4] sm:$0xf]
      %v483 = vld [vmem:[%s436 + $0x8] sm:$0xf]
      %v484 = vld [vmem:[%s436 + $0xc] sm:$0xf]
      %v485 = vld [vmem:[%s436 + $0x10] sm:$0xf]
      %v486 = vld [vmem:[%s436 + $0x14] sm:$0xf]
      %v487 = vld [vmem:[%s1] sm:$0xf]
      %v488 = vld [vmem:[%s1 + $0x4] sm:$0xf]
      %v489 = vld [vmem:[%s1 + $0x8] sm:$0xf]
      %v490 = vld [vmem:[%s1 + $0xc] sm:$0xf]
      %v491 = vld [vmem:[%s1 + $0x10] sm:$0xf]
      %v492 = vld [vmem:[%s1 + $0x14] sm:$0xf]
      %v493 = vld [vmem:[%s1 + $0x18] sm:$0xf]
      %v494 = vld [vmem:[%s1 + $0x1c] sm:$0xf]
      %v495 = vld [vmem:[%s1 + $0x20] sm:$0xf]
      %v496 = vld [vmem:[%s1 + $0x24] sm:$0xf]
      %v497 = vld [vmem:[%s1 + $0x28] sm:$0xf]
      %v498 = vld [vmem:[%s1 + $0x2c] sm:$0xf]
      %v499 = vld [vmem:[%s1 + $0x30] sm:$0xf]
      %v500 = vld [vmem:[%s1 + $0x34] sm:$0xf]
      %v501 = vld [vmem:[%s1 + $0x38] sm:$0xf]
      %v502 = vld [vmem:[%s1 + $0x3c] sm:$0xf]
      %v503 = vld [vmem:[%s2] sm:$0x1]
      %v505 = vperm.slane %v503, 0
      %v513 = vunpack.c.l.b16 %v481
      %v514 = vunpack.c.l.b16 %v482
      %v515 = vunpack.c.l.b16 %v483
      %v516 = vunpack.c.l.b16 %v484
      %v517 = vunpack.c.l.b16 %v485
      %v518 = vunpack.c.l.b16 %v486
      %v519 = vpack.c.b16 %v514, %v513
      %v520 = vpack.c.b16 %v516, %v515
      %v521 = vpack.c.b16 %v518, %v517
      %v541 = vunpack.c.l.b16 %v487
      %v542 = vunpack.c.l.b16 %v488
      %v543 = vunpack.c.l.b16 %v489
      %v544 = vunpack.c.l.b16 %v490
      %v545 = vunpack.c.l.b16 %v491
      %v546 = vunpack.c.l.b16 %v492
      %v547 = vunpack.c.l.b16 %v493
      %v548 = vunpack.c.l.b16 %v494
      %v549 = vunpack.c.l.b16 %v495
      %v550 = vunpack.c.l.b16 %v496
      %v551 = vunpack.c.l.b16 %v497
      %v552 = vunpack.c.l.b16 %v498
      %v553 = vunpack.c.l.b16 %v499
      %v554 = vunpack.c.l.b16 %v500
      %v555 = vunpack.c.l.b16 %v501
      %v556 = vunpack.c.l.b16 %v502
      %v557 = vpack.c.b16 %v542, %v541
      %v558 = vpack.c.b16 %v544, %v543
      %v559 = vpack.c.b16 %v546, %v545
      %v560 = vpack.c.b16 %v548, %v547
      %v561 = vpack.c.b16 %v550, %v549
      %v562 = vpack.c.b16 %v552, %v551
      %v563 = vpack.c.b16 %v554, %v553
      %v564 = vpack.c.b16 %v556, %v555
      %573 = vmatpush.bf16.msra.mxu0 %v564
      %574 = vmatpush.bf16.msra.mxu0 %v563
      %575 = vmatpush.bf16.msra.mxu0 %v562
      %576 = vmatpush.bf16.msra.mxu0 %v561
      %577 = vmatpush.bf16.msra.mxu0 %v560
      %578 = vmatpush.bf16.msra.mxu0 %v559
      %579 = vmatpush.bf16.msra.mxu0 %v558
      %580 = vmatpush.bf16.msra.mxu0 %v557
      %581 = vmatmul.bf16.gmra.mxu0 %v519
      %v582 = vpop.f32.mrf.mxu0
      %v583 = vadd.f32 %v505, %v582
      %v584 = vpop.f32.mrf.mxu0
      %v585 = vadd.f32 %v505, %v584
      %586 = vmatmul.bf16.gmra.mxu0 %v520
      %v587 = vpop.f32.mrf.mxu0
      %v588 = vadd.f32 %v505, %v587
      %v589 = vpop.f32.mrf.mxu0
      %v590 = vadd.f32 %v505, %v589
      %591 = vmatmul.bf16.gmra.mxu0 %v521
      %v592 = vpop.f32.mrf.mxu0
      %v593 = vadd.f32 %v505, %v592
      %v594 = vpop.f32.mrf.mxu0
      %v595 = vadd.f32 %v505, %v594
      %596 = vdwg.mxu0
      %v597 = vld [vmem:[%s379] sm:$0xff]
      %v598 = vld [vmem:[%s379 + $0x8] sm:$0xff]
      %v599 = vld [vmem:[%s379 + $0x10] sm:$0xff]
      %v600 = vld [vmem:[%s379 + $0x18] sm:$0xff]
      %v601 = vld [vmem:[%s379 + $0x20] sm:$0xff]
      %v602 = vld [vmem:[%s379 + $0x28] sm:$0xff]
      %604 = vset.pattern.permute.xlu0 0
      %605 = vperm.xlu0 %604, %v597
      %v606 = vpop.permute.xlu0 %605
      %609 = vset.pattern.permute.xlu0 0
      %610 = vperm.xlu0 %609, %v598
      %v611 = vpop.permute.xlu0 %610
      %614 = vset.pattern.permute.xlu0 0
      %615 = vperm.xlu0 %614, %v599
      %v616 = vpop.permute.xlu0 %615
      %619 = vset.pattern.permute.xlu0 0
      %620 = vperm.xlu0 %619, %v600
      %v621 = vpop.permute.xlu0 %620
      %624 = vset.pattern.permute.xlu0 0
      %625 = vperm.xlu0 %624, %v601
      %v626 = vpop.permute.xlu0 %625
      %629 = vset.pattern.permute.xlu0 0
      %630 = vperm.xlu0 %629, %v602
      %v631 = vpop.permute.xlu0 %630
      %v633 = vmul.f32 %v583, %v606
      %v634 = vmul.f32 %v585, %v611
      %v635 = vmul.f32 %v588, %v616
      %v636 = vmul.f32 %v590, %v621
      %v637 = vmul.f32 %v593, %v626
      %v638 = vmul.f32 %v595, %v631
      %v639 = vld [vmem:[%s9] sm:$0xff]
      %v640 = vld [vmem:[%s9 + $0x8] sm:$0xff]
      %v641 = vld [vmem:[%s9 + $0x10] sm:$0xff]
      %v642 = vld [vmem:[%s9 + $0x18] sm:$0xff]
      %v643 = vld [vmem:[%s9 + $0x20] sm:$0xff]
      %v644 = vld [vmem:[%s9 + $0x28] sm:$0xff]
      %v645 = vld [vmem:[%s9 + $0x30] sm:$0xff]
      %v646 = vld [vmem:[%s9 + $0x38] sm:$0xff]
      %v647 = vld [vmem:[%s9 + $0x40] sm:$0xff]
      %v648 = vld [vmem:[%s9 + $0x48] sm:$0xff]
      %v649 = vld [vmem:[%s9 + $0x50] sm:$0xff]
      %v650 = vld [vmem:[%s9 + $0x58] sm:$0xff]
      %v651 = vrot.slane %v633, 7
      %v652 = vrot.slane %v634, 7
      %v653 = vrot.slane %v635, 7
      %v654 = vrot.slane %v636, 7
      %v655 = vrot.slane %v637, 7
      %v656 = vrot.slane %v638, 7
      %v657 = vlaneseq
      %v658 = vshrl.u32 %v657, 7
      %vm659 = vcmp.lt.s32.totalorder %v658, 1
      %v660 = vsel %vm659, %v655, %v656
      %v661 = vsel %vm659, %v654, %v655
      %v662 = vsel %vm659, %v653, %v654
      %v663 = vsel %vm659, %v652, %v653
      %v664 = vsel %vm659, %v651, %v652
      %v665 = vsel %vm659, %v656, %v651
      %667 = vset.pattern.permute.xlu0 0
      %668 = vperm.xlu0 %667, %v639
      %v669 = vpop.permute.xlu0 %668
      %672 = vset.pattern.permute.xlu0 0
      %673 = vperm.xlu0 %672, %v640
      %v674 = vpop.permute.xlu0 %673
      %677 = vset.pattern.permute.xlu0 0
      %678 = vperm.xlu0 %677, %v641
      %v679 = vpop.permute.xlu0 %678
      %682 = vset.pattern.permute.xlu0 0
      %683 = vperm.xlu0 %682, %v642
      %v684 = vpop.permute.xlu0 %683
      %687 = vset.pattern.permute.xlu0 0
      %688 = vperm.xlu0 %687, %v643
      %v689 = vpop.permute.xlu0 %688
      %692 = vset.pattern.permute.xlu0 0
      %693 = vperm.xlu0 %692, %v644
      %v694 = vpop.permute.xlu0 %693
      %v696 = vmul.f32 %v665, %v669
      %v697 = vmul.f32 %v664, %v674
      %v698 = vmul.f32 %v663, %v679
      %v699 = vmul.f32 %v662, %v684
      %v700 = vmul.f32 %v661, %v689
      %v701 = vmul.f32 %v660, %v694
      %v702 = vrot.slane %v633, 1
      %v703 = vrot.slane %v634, 1
      %v704 = vrot.slane %v635, 1
      %v705 = vrot.slane %v636, 1
      %v706 = vrot.slane %v637, 1
      %v707 = vrot.slane %v638, 1
      %vm708 = vcmp.lt.s32.totalorder %v658, 7
      %v709 = vsel %vm708, %v706, %v707
      %v710 = vsel %vm708, %v705, %v706
      %v711 = vsel %vm708, %v704, %v705
      %v712 = vsel %vm708, %v703, %v704
      %v713 = vsel %vm708, %v702, %v703
      %v714 = vsel %vm708, %v707, %v702
      %716 = vset.pattern.permute.xlu0 0
      %717 = vperm.xlu0 %716, %v645
      %v718 = vpop.permute.xlu0 %717
      %721 = vset.pattern.permute.xlu0 0
      %722 = vperm.xlu0 %721, %v646
      %v723 = vpop.permute.xlu0 %722
      %726 = vset.pattern.permute.xlu0 0
      %727 = vperm.xlu0 %726, %v647
      %v728 = vpop.permute.xlu0 %727
      %731 = vset.pattern.permute.xlu0 0
      %732 = vperm.xlu0 %731, %v648
      %v733 = vpop.permute.xlu0 %732
      %736 = vset.pattern.permute.xlu0 0
      %737 = vperm.xlu0 %736, %v649
      %v738 = vpop.permute.xlu0 %737
      %741 = vset.pattern.permute.xlu0 0
      %742 = vperm.xlu0 %741, %v650
      %v743 = vpop.permute.xlu0 %742
      %v745 = vmul.f32 %v713, %v718
      %v746 = vmul.f32 %v712, %v723
      %v747 = vmul.f32 %v711, %v728
      %v748 = vmul.f32 %v710, %v733
      %v749 = vmul.f32 %v709, %v738
      %v750 = vmul.f32 %v714, %v743
      %v751 = vld [vmem:[%s3] sm:$0x7]
      %v752 = vld [vmem:[%s3 + $0x4] sm:$0x7]
      %v753 = vld [vmem:[%s3 + $0x8] sm:$0x7]
      %v754 = vld [vmem:[%s4] sm:$0x1]
      %v756 = vperm.slane %v754, 0
      %v758 = vadd.f32 %v756, 0.0
      %v759 = vperm.slane %v751, 0
      %v760 = vmul.f32 %v696, %v759
      %v761 = vmul.f32 %v697, %v759
      %v762 = vmul.f32 %v698, %v759
      %v763 = vmul.f32 %v699, %v759
      %v764 = vadd.f32 %v758, %v760
      %v765 = vadd.f32 %v758, %v761
      %v766 = vadd.f32 %v758, %v762
      %v767 = vadd.f32 %v758, %v763
      %v768 = vperm.slane %v751, 1
      %v769 = vmul.f32 %v633, %v768
      %v770 = vmul.f32 %v634, %v768
      %v771 = vmul.f32 %v635, %v768
      %v772 = vmul.f32 %v636, %v768
      %v773 = vadd.f32 %v764, %v769
      %v774 = vadd.f32 %v765, %v770
      %v775 = vadd.f32 %v766, %v771
      %v776 = vadd.f32 %v767, %v772
      %v777 = vperm.slane %v751, 2
      %v778 = vmul.f32 %v745, %v777
      %v779 = vmul.f32 %v746, %v777
      %v780 = vmul.f32 %v747, %v777
      %v781 = vmul.f32 %v748, %v777
      %v782 = vadd.f32 %v773, %v778
      %v783 = vadd.f32 %v774, %v779
      %v784 = vadd.f32 %v775, %v780
      %v785 = vadd.f32 %v776, %v781
      %v786 = vperm.slane %v752, 0
      %v787 = vmul.f32 %v697, %v786
      %v788 = vmul.f32 %v698, %v786
      %v789 = vmul.f32 %v699, %v786
      %v790 = vmul.f32 %v700, %v786
      %v791 = vadd.f32 %v782, %v787
      %v792 = vadd.f32 %v783, %v788
      %v793 = vadd.f32 %v784, %v789
      %v794 = vadd.f32 %v785, %v790
      %v795 = vperm.slane %v752, 1
      %v796 = vmul.f32 %v634, %v795
      %v797 = vmul.f32 %v635, %v795
      %v798 = vmul.f32 %v636, %v795
      %v799 = vmul.f32 %v637, %v795
      %v800 = vadd.f32 %v791, %v796
      %v801 = vadd.f32 %v792, %v797
      %v802 = vadd.f32 %v793, %v798
      %v803 = vadd.f32 %v794, %v799
      %v804 = vperm.slane %v752, 2
      %v805 = vmul.f32 %v746, %v804
      %v806 = vmul.f32 %v747, %v804
      %v807 = vmul.f32 %v748, %v804
      %v808 = vmul.f32 %v749, %v804
      %v809 = vadd.f32 %v800, %v805
      %v810 = vadd.f32 %v801, %v806
      %v811 = vadd.f32 %v802, %v807
      %v812 = vadd.f32 %v803, %v808
      %v813 = vperm.slane %v753, 0
      %v814 = vmul.f32 %v698, %v813
      %v815 = vmul.f32 %v699, %v813
      %v816 = vmul.f32 %v700, %v813
      %v817 = vmul.f32 %v701, %v813
      %v818 = vadd.f32 %v809, %v814
      %v819 = vadd.f32 %v810, %v815
      %v820 = vadd.f32 %v811, %v816
      %v821 = vadd.f32 %v812, %v817
      %v822 = vperm.slane %v753, 1
      %v823 = vmul.f32 %v635, %v822
      %v824 = vmul.f32 %v636, %v822
      %v825 = vmul.f32 %v637, %v822
      %v826 = vmul.f32 %v638, %v822
      %v827 = vadd.f32 %v818, %v823
      %v828 = vadd.f32 %v819, %v824
      %v829 = vadd.f32 %v820, %v825
      %v830 = vadd.f32 %v821, %v826
      %v831 = vperm.slane %v753, 2
      %v832 = vmul.f32 %v747, %v831
      %v833 = vmul.f32 %v748, %v831
      %v834 = vmul.f32 %v749, %v831
      %v835 = vmul.f32 %v750, %v831
      %v836 = vadd.f32 %v827, %v832
      %v837 = vadd.f32 %v828, %v833
      %v838 = vadd.f32 %v829, %v834
      %v839 = vadd.f32 %v830, %v835
      %v840 = vld [vmem:[%s5] sm:$0x1]
      %v842 = vperm.slane %v840, 0
      %v844 = vmul.f32 %v842, %v836
      %v845 = vmul.f32 %v842, %v837
      %v846 = vmul.f32 %v842, %v838
      %v847 = vmul.f32 %v842, %v839
      %v848 = vadd.f32 %v844, %v634
      %v849 = vadd.f32 %v845, %v635
      %v850 = vadd.f32 %v846, %v636
      %v851 = vadd.f32 %v847, %v637
      %v852 = vpack.c.bf16 %v849, %v848
      %v853 = vpack.c.bf16 %v851, %v850
      %v854 = vld [vmem:[%s6] sm:$0xf]
      %v855 = vld [vmem:[%s6 + $0x4] sm:$0xf]
      %v856 = vld [vmem:[%s6 + $0x8] sm:$0xf]
      %v857 = vld [vmem:[%s6 + $0xc] sm:$0xf]
      %v858 = vld [vmem:[%s6 + $0x10] sm:$0xf]
      %v859 = vld [vmem:[%s6 + $0x14] sm:$0xf]
      %v860 = vld [vmem:[%s6 + $0x18] sm:$0xf]
      %v861 = vld [vmem:[%s6 + $0x1c] sm:$0xf]
      %v862 = vld [vmem:[%s6 + $0x20] sm:$0xf]
      %v863 = vld [vmem:[%s6 + $0x24] sm:$0xf]
      %v864 = vld [vmem:[%s6 + $0x28] sm:$0xf]
      %v865 = vld [vmem:[%s6 + $0x2c] sm:$0xf]
      %v866 = vld [vmem:[%s6 + $0x30] sm:$0xf]
      %v867 = vld [vmem:[%s6 + $0x34] sm:$0xf]
      %v868 = vld [vmem:[%s6 + $0x38] sm:$0xf]
      %v869 = vld [vmem:[%s6 + $0x3c] sm:$0xf]
      %v870 = vld [vmem:[%s7] sm:$0x1]
      %v872 = vperm.slane %v870, 0
      %v890 = vunpack.c.l.b16 %v854
      %v891 = vunpack.c.l.b16 %v855
      %v892 = vunpack.c.l.b16 %v856
      %v893 = vunpack.c.l.b16 %v857
      %v894 = vunpack.c.l.b16 %v858
      %v895 = vunpack.c.l.b16 %v859
      %v896 = vunpack.c.l.b16 %v860
      %v897 = vunpack.c.l.b16 %v861
      %v898 = vunpack.c.l.b16 %v862
      %v899 = vunpack.c.l.b16 %v863
      %v900 = vunpack.c.l.b16 %v864
      %v901 = vunpack.c.l.b16 %v865
      %v902 = vunpack.c.l.b16 %v866
      %v903 = vunpack.c.l.b16 %v867
      %v904 = vunpack.c.l.b16 %v868
      %v905 = vunpack.c.l.b16 %v869
      %v906 = vpack.c.b16 %v891, %v890
      %v907 = vpack.c.b16 %v893, %v892
      %v908 = vpack.c.b16 %v895, %v894
      %v909 = vpack.c.b16 %v897, %v896
      %v910 = vpack.c.b16 %v899, %v898
      %v911 = vpack.c.b16 %v901, %v900
      %v912 = vpack.c.b16 %v903, %v902
      %v913 = vpack.c.b16 %v905, %v904
      %922 = vmatpush.bf16.msra.mxu0 %v913
      %923 = vmatpush.bf16.msra.mxu0 %v912
      %924 = vmatpush.bf16.msra.mxu0 %v911
      %925 = vmatpush.bf16.msra.mxu0 %v910
      %926 = vmatpush.bf16.msra.mxu0 %v909
      %927 = vmatpush.bf16.msra.mxu0 %v908
      %928 = vmatpush.bf16.msra.mxu0 %v907
      %929 = vmatpush.bf16.msra.mxu0 %v906
      %930 = vmatmul.bf16.gmra.mxu0 %v852
      %v931 = vpop.f32.mrf.mxu0
      %v932 = vadd.f32 %v872, %v931
      %v933 = vpop.f32.mrf.mxu0
      %v934 = vadd.f32 %v872, %v933
      %935 = vmatmul.bf16.gmra.mxu0 %v853
      %v936 = vpop.f32.mrf.mxu0
      %v937 = vadd.f32 %v872, %v936
      %v938 = vpop.f32.mrf.mxu0
      %v939 = vadd.f32 %v872, %v938
      %940 = vdwg.mxu0
      %941 = vst [vmem:[%s388] sm:$0xff] %v932
      %942 = vst [vmem:[%s388 + $0x8] sm:$0xff] %v934
      %943 = vst [vmem:[%s388 + $0x10] sm:$0xff] %v937
      %944 = vst [vmem:[%s388 + $0x18] sm:$0xff] %v939
      // Predicated region
      $region103: #{_lambda_.2} parent=55 // pred_check
        %p945 = pneg %p405
      $region104: #{_lambda_.2} parent=55 // pred_check_branch
        %947 = sbr.rel (%p945) target = $region106
      $region105: #{_lambda_.2} parent=55 // pred_region
        %948 = vst [vmem:[%s392] sm:$0x1] 0.0
      $region106: #{_lambda_.2} parent=55 // pred_fallthru
        _
      %v949 = vld [vmem:[%s392] sm:$0x1]
      %v950 = vadd.f32 %v932, %v934
      %v951 = vadd.f32 %v950, %v937
      %v952 = vadd.f32 %v951, %v939
      %v953 = vrot.slane %v952, 4
      %v954 = vadd.f32 %v952, %v953
      %v955 = vrot.slane %v954, 2
      %v956 = vadd.f32 %v954, %v955
      %v957 = vrot.slane %v956, 1
      %v958 = vadd.f32 %v956, %v957
      %v959 = vadd.f32 %v949, %v958
      %960 = vst [vmem:[%s392] sm:$0x1] %v959
      %s961 = smul.u32 4, %s28
      %p962 = scmp.lt.s32.totalorder %s27, 1
      %s963 = scalar_select %p962, %s27, 1
      %p964 = scmp.lt.s32.totalorder %s961, 7
      %s965 = scalar_select %p964, %s961, 7
      %s966 = smul.addr %s963, 8
      %s967 = sadd.s32 %s965, %s966
      %s968 = smul.addr %s967, 8
      %s969 = scalar_lea.vmem %s10, %s968
      %p970 = scmp.lt.s32.totalorder %s27, 1
      %s971 = scalar_select %p970, %s27, 1
      %s972 = scalar_lea.vmem %s11, %s971
      // Predicated region
      $region107: #{_lambda_.2} parent=55 // pred_check
        %p973 = pneg %p249
      $region108: #{_lambda_.2} parent=55 // pred_check_branch
        %975 = sbr.rel (%p973) target = $region110
      $region109: #{_lambda_.2} parent=55 // pred_region
        %s976 = smul.u32 4, %s28
      $region110: #{_lambda_.2} parent=55 // pred_fallthru
        _
      // Predicated region
      $region111: #{_lambda_.2} parent=55 // pred_check
        %p977 = pneg %p275
      $region112: #{_lambda_.2} parent=55 // pred_check_branch
        %979 = sbr.rel (%p977) target = $region114
      $region113: #{_lambda_.2} parent=55 // pred_region
        _
      $region114: #{_lambda_.2} parent=55 // pred_fallthru
        _
    $region56: #{_lambda_.2} parent=5 // pred_fallthru
      _
    %p980 = scmp.le.s32.totalorder 2, %s18
    // Predicated region
    $region115: #{_lambda_.2} parent=5 // pred_check
      %p981 = pneg %p980
    $region116: #{_lambda_.2} parent=5 // pred_check_branch
      %983 = sbr.rel (%p981) target = $region118
    $region117: #{_lambda_.2} parent=5 // pred_region
      %s984 = ssub.s32 %s18, 2
      // Predicated region
      $region119: #{_lambda_.2} parent=117 // pred_check
        %p985 = pneg %p255
      $region120: #{_lambda_.2} parent=117 // pred_check_branch
        %987 = sbr.rel (%p985) target = $region122
      $region121: #{_lambda_.2} parent=117 // pred_region
        %s988 = smul.u32 4, %s30
        %p989 = scmp.lt.s32.totalorder %s29, 1
        %s990 = scalar_select %p989, %s29, 1
        %p991 = scmp.lt.s32.totalorder %s988, 7
        %s992 = scalar_select %p991, %s988, 7
        %s993 = smul.addr %s990, 8
        %s994 = sadd.s32 %s992, %s993
        %s995 = smul.addr %s994, 8
        %s996 = scalar_lea.vmem %s10, %s995
      $region122: #{_lambda_.2} parent=117 // pred_fallthru
        _
      // Predicated region
      $region123: #{_lambda_.2} parent=117 // pred_check
        %p997 = pneg %p281
      $region124: #{_lambda_.2} parent=117 // pred_check_branch
        %999 = sbr.rel (%p997) target = $region126
      $region125: #{_lambda_.2} parent=117 // pred_region
        %p1000 = scmp.lt.s32.totalorder %s29, 1
        %s1001 = scalar_select %p1000, %s29, 1
        %s1002 = scalar_lea.vmem %s11, %s1001
      $region126: #{_lambda_.2} parent=117 // pred_fallthru
        _
    $region118: #{_lambda_.2} parent=5 // pred_fallthru
      _
  $region6: #{_lambda_.2} parent=0 // loop_footer
    %s22 = sadd.s32 1, %s18
  $region7: #{_lambda_.2} parent=0 // loop_footer_branch
    %17 = sbr.rel target = $region3
  $region8: #{_lambda_.2} parent=0 // loop_exit
    _
  %1003 = vsyncmov [#allocation3]
  %s1004 = vpop.sfrf %1003
  %p1005 = scmp.eq.s32.totalorder %s1004, 0
  %p1006 = pneg %p1005
  %1008 = shalt.err (%p1006)
  %s1009 = scalar_lea.sflag [#allocation3], 1
  %1010 = vsyncmov %s1009
  %s1011 = vpop.sfrf %1010
  %p1012 = scmp.eq.s32.totalorder %s1011, 0
  %p1013 = pneg %p1012
  %1015 = shalt.err (%p1013)

</llo_original>
